<compile_context>
chip_gen: v5e
topology: v5e:2x2
jax: 0.10.0
libtpu: 0.0.40
codegen_flags: <defaults>
</compile_context>

<pallas_src>
import jax
import jax.numpy as jnp
from jax import lax
from jax.experimental import pallas as pl
from jax.experimental.pallas import tpu as pltpu


# --------------------------------------------------------------------------- #
# Fused kernel (one batch element per grid step)
# --------------------------------------------------------------------------- #
def fused_net_kernel(x_ref, cw_ref, cb_ref,
                     wih0_ref, whh0_ref, b0_ref,
                     wih1_ref, whh1_ref, b1_ref,
                     lin_w_ref, lin_b_ref,
                     ctw_ref, ctb_ref, ow_ref, ob_ref,
                     o_ref,
                     seq_ref, xg0_ref, lstm_ref, xp_ref):
    H, W = x_ref.shape                       # (8, 8)
    KH = KW = 3
    Ho, Wo = H - KH + 1, W - KW + 1          # (6, 6)
    T = Ho * Wo                              # 36
    C = cw_ref.shape[1]                      # 8 conv channels
    HID = whh0_ref.shape[0]                  # 16 LSTM hidden

    # ---- conv1 (1 -> 8, valid 3x3) + ReLU : 9 broadcast taps ---------------- #
    x = x_ref[...]
    cw = cw_ref[...]
    acc = jnp.zeros((Ho, Wo, C), jnp.float32)
    for kh in range(KH):
        for kw in range(KW):
            patch = x[kh:kh + Ho, kw:kw + Wo]                  # (Ho, Wo)
            wrow = cw[kh * KW + kw: kh * KW + kw + 1, :]       # (1, C)
            acc = acc + patch[:, :, None] * wrow
    conv_out = jnp.maximum(acc + cb_ref[...], 0.0)             # (Ho, Wo, C)

    # ---- conv output -> (T, C) sequence matrix in VMEM scratch -------------- #
    for h in range(Ho):
        seq_ref[pl.ds(h * Wo, Wo), :] = conv_out[h]

    # ---- LSTM layer-0 input projection hoisted out of the time loop --------- #
    xg0_ref[...] = (jnp.dot(seq_ref[...], wih0_ref[...],
                            preferred_element_type=jnp.float32) + b0_ref[...])

    # hoisted loop-invariant weights / bias
    whh0 = whh0_ref[...]
    wih1 = wih1_ref[...]
    whh1 = whh1_ref[...]
    b1 = b1_ref[...]

    def cell_tail(gates, c):
        # PyTorch gate order: i, f, g, o
        i = jax.nn.sigmoid(gates[:, 0 * HID:1 * HID])
        f = jax.nn.sigmoid(gates[:, 1 * HID:2 * HID])
        g = jnp.tanh(gates[:, 2 * HID:3 * HID])
        o = jax.nn.sigmoid(gates[:, 3 * HID:4 * HID])
        c_new = f * c + i * g
        return o * jnp.tanh(c_new), c_new

    def step(t, carry):
        h0, c0, h1, c1 = carry
        # layer-1 recurrent dot depends only on the carry -> off the h0 path
        rec1 = jnp.dot(h1, whh1, preferred_element_type=jnp.float32)
        g0 = xg0_ref[pl.ds(t, 1), :] + jnp.dot(
            h0, whh0, preferred_element_type=jnp.float32)
        h0, c0 = cell_tail(g0, c0)
        g1 = jnp.dot(h0, wih1, preferred_element_type=jnp.float32) + rec1 + b1
        h1, c1 = cell_tail(g1, c1)
        lstm_ref[pl.ds(t, 1), :] = h1
        return (h0, c0, h1, c1)

    z = jnp.zeros((1, HID), jnp.float32)
    lax.fori_loop(0, T, step, (z, z, z, z))

    # ---- linear1 (16 -> 8): one matmul over the whole sequence -------------- #
    lin1 = (jnp.dot(lstm_ref[...], lin_w_ref[...],
                    preferred_element_type=jnp.float32) + lin_b_ref[...])  # (T, C)

    # ---- ConvTranspose2d(8 -> 1, 3): valid conv over zero-padded features
    #      with the spatially flipped kernel ---------------------------------- #
    xp_ref[...] = jnp.zeros_like(xp_ref)                       # (H+2, W+2, C)
    for h in range(Ho):
        xp_ref[KH - 1 + h, KW - 1: KW - 1 + Wo, :] = lin1[h * Wo:(h + 1) * Wo, :]
    xp = xp_ref[...]
    ctw = ctw_ref[...]
    ct = jnp.zeros((H, W), jnp.float32)
    for kh in range(KH):
        for kw in range(KW):
            patch = xp[kh:kh + H, kw:kw + W, :]                # (H, W, C)
            wrow = ctw[kh * KW + kw: kh * KW + kw + 1, :]      # (1, C)
            ct = ct + jnp.sum(patch * wrow, axis=-1)
    ct = ct + ctb_ref[...]                                     # (H, W)

    # ---- output Linear(8 -> 1) over the W axis, fused into this kernel ------ #
    o_ref[...] = jnp.sum(ct * ow_ref[...], axis=-1, keepdims=True) + ob_ref[...]


# --------------------------------------------------------------------------- #
# Forward pass (single fused pallas_call, grid over batch)
# --------------------------------------------------------------------------- #
_PARAM_ORDER = ("conv1_w", "conv1_b", "wih0", "whh0", "b0",
                "wih1", "whh1", "b1", "lin1_w", "lin1_b",
                "ct_w", "ct_b", "out_w", "out_b")


def net_forward(x, p):
    N, cin, H, W = x.shape                                     # (N, 1, 8, 8)
    assert cin == 1
    x3 = x[:, 0, :, :]                                         # (N, H, W)
    ws = [p[k] for k in _PARAM_ORDER]

    Ho, Wo = H - 2, W - 2
    T = Ho * Wo
    C, HID, G = 8, 16, 64

    # advisory cost estimate (per review: helps XLA schedule the tiny custom call)
    flops = N * 2 * (9 * T * C + T * C * G + T * (3 * HID * G)
                     + T * HID * C + 9 * H * W * C + H * W)
    transcendentals = N * T * 10 * HID
    bytes_accessed = 4 * (x3.size + N * sum(w.size for w in ws) + N * H)

    out = pl.pallas_call(
        fused_net_kernel,
        out_shape=jax.ShapeDtypeStruct((N, H, 1), jnp.float32),
        grid=(N,),
        in_specs=[pl.BlockSpec((None, H, W), lambda n: (n, 0, 0))]
                 + [pl.BlockSpec(w.shape, lambda n: (0, 0)) for w in ws],
        out_specs=pl.BlockSpec((None, H, 1), lambda n: (n, 0, 0)),
        scratch_shapes=[
            pltpu.VMEM((T, C), jnp.float32),           # conv output as sequence
            pltpu.VMEM((T, 4 * HID), jnp.float32),     # precomputed l0 input gates
            pltpu.VMEM((T, HID), jnp.float32),         # LSTM output sequence
            pltpu.VMEM((H + 2, W + 2, C), jnp.float32),  # zero-padded convT input
        ],
        compiler_params=pltpu.CompilerParams(
            dimension_semantics=("parallel",),         # v7x: batch over both TCs
            vmem_limit_bytes=32 * 1024 * 1024),
        cost_estimate=pl.CostEstimate(flops=flops,
                                      transcendentals=transcendentals,
                                      bytes_accessed=bytes_accessed),
    )(x3, *ws)
    return out.reshape(N, 1, H, 1)


# --------------------------------------------------------------------------- #
# Deterministic parameter init (PyTorch shapes -> kernel layouts)
# --------------------------------------------------------------------------- #
def init_params(key):
    ks = jax.random.split(key, 16)

    def u(k, shape, fan_in):
        bnd = 1.0 / jnp.sqrt(jnp.float32(fan_in))
        return jax.random.uniform(k, shape, jnp.float32, -bnd, bnd)

    # PyTorch-shaped parameters
    conv1_w = u(ks[0], (8, 1, 3, 3), 9)          # (Cout, Cin, KH, KW)
    conv1_b = u(ks[1], (8,), 9)
    w_ih_l0 = u(ks[2], (64, 8), 16)
    w_hh_l0 = u(ks[3], (64, 16), 16)
    b_ih_l0 = u(ks[4], (64,), 16)
    b_hh_l0 = u(ks[5], (64,), 16)
    w_ih_l1 = u(ks[6], (64, 16), 16)
    w_hh_l1 = u(ks[7], (64, 16), 16)
    b_ih_l1 = u(ks[8], (64,), 16)
    b_hh_l1 = u(ks[9], (64,), 16)
    lin1_w = u(ks[10], (8, 16), 16)
    lin1_b = u(ks[11], (8,), 16)
    ct_w = u(ks[12], (8, 1, 3, 3), 72)           # (Cin, Cout, KH, KW)
    ct_b = u(ks[13], (1,), 72)
    out_w = u(ks[14], (1, 8), 8)
    out_b = u(ks[15], (1,), 8)

    return {
        # (KH*KW, Cout) rows indexed by kh*3+kw
        "conv1_w": conv1_w.transpose(2, 3, 1, 0)[:, :, 0, :].reshape(9, 8),
        "conv1_b": conv1_b[None, :],                                      # (1, 8)
        "wih0": w_ih_l0.T, "whh0": w_hh_l0.T,                             # (8,64),(16,64)
        "b0": (b_ih_l0 + b_hh_l0)[None, :],                               # (1, 64)
        "wih1": w_ih_l1.T, "whh1": w_hh_l1.T,                             # (16,64),(16,64)
        "b1": (b_ih_l1 + b_hh_l1)[None, :],                               # (1, 64)
        "lin1_w": lin1_w.T, "lin1_b": lin1_b[None, :],                    # (16,8),(1,8)
        # spatially flipped conv-transpose kernel as (KH*KW, Cin), Cout=1 squeezed
        "ct_w": jnp.flip(ct_w, axis=(2, 3)).transpose(2, 3, 0, 1)[:, :, :, 0].reshape(9, 8),
        "ct_b": ct_b.reshape(1, 1),                                       # (1, 1)
        "out_w": out_w, "out_b": out_b[None, :],                          # (1,8),(1,1)
    }


if __name__ == "__main__":
    root = jax.random.PRNGKey(0)
    kp, kx = jax.random.split(root)
    params = init_params(kp)
    x = jax.random.normal(kx, (2, 1, 8, 8), jnp.float32)
    y = jax.jit(net_forward)(x, params)
    jax.block_until_ready(y)
    assert y.shape == (2, 1, 8, 1) and y.dtype == jnp.float32
    print("KERNEL_OK")
</pallas_src>

<mosaic_0001>
module attributes {stable_mosaic.version = 11 : i64} {
  func.func @fused_net_kernel(%arg0: i32, %arg1: memref<1x8x8xf32, #tpu.memory_space<vmem>>, %arg2: memref<9x8xf32, #tpu.memory_space<vmem>>, %arg3: memref<1x8xf32, #tpu.memory_space<vmem>>, %arg4: memref<8x64xf32, #tpu.memory_space<vmem>>, %arg5: memref<16x64xf32, #tpu.memory_space<vmem>>, %arg6: memref<1x64xf32, #tpu.memory_space<vmem>>, %arg7: memref<16x64xf32, #tpu.memory_space<vmem>>, %arg8: memref<16x64xf32, #tpu.memory_space<vmem>>, %arg9: memref<1x64xf32, #tpu.memory_space<vmem>>, %arg10: memref<16x8xf32, #tpu.memory_space<vmem>>, %arg11: memref<1x8xf32, #tpu.memory_space<vmem>>, %arg12: memref<9x8xf32, #tpu.memory_space<vmem>>, %arg13: memref<1x1xf32, #tpu.memory_space<vmem>>, %arg14: memref<1x8xf32, #tpu.memory_space<vmem>>, %arg15: memref<1x1xf32, #tpu.memory_space<vmem>>, %arg16: memref<1x8x1xf32, #tpu.memory_space<vmem>>, %arg17: memref<36x8xf32, #tpu.memory_space<vmem>>, %arg18: memref<36x64xf32, #tpu.memory_space<vmem>>, %arg19: memref<36x16xf32, #tpu.memory_space<vmem>>, %arg20: memref<10x10x8xf32, #tpu.memory_space<vmem>>) attributes {dimension_semantics = [#tpu.dimension_semantics<parallel>], iteration_bounds = array<i64: 2>, scalar_prefetch = 0 : i64, scratch_operands = 4 : i64, tpu.core_type = #tpu.core_type<tc>, window_params = [{transform_indices = @transform_0, window_bounds = array<i64: 1, 8, 8>}, {pipeline_mode = #tpu.pipeline_mode<synchronous>, transform_indices = @transform_1, window_bounds = array<i64: 9, 8>}, {pipeline_mode = #tpu.pipeline_mode<synchronous>, transform_indices = @transform_2, window_bounds = array<i64: 1, 8>}, {pipeline_mode = #tpu.pipeline_mode<synchronous>, transform_indices = @transform_3, window_bounds = array<i64: 8, 64>}, {pipeline_mode = #tpu.pipeline_mode<synchronous>, transform_indices = @transform_4, window_bounds = array<i64: 16, 64>}, {pipeline_mode = #tpu.pipeline_mode<synchronous>, transform_indices = @transform_5, window_bounds = array<i64: 1, 64>}, {pipeline_mode = #tpu.pipeline_mode<synchronous>, transform_indices = @transform_6, window_bounds = array<i64: 16, 64>}, {pipeline_mode = #tpu.pipeline_mode<synchronous>, transform_indices = @transform_7, window_bounds = array<i64: 16, 64>}, {pipeline_mode = #tpu.pipeline_mode<synchronous>, transform_indices = @transform_8, window_bounds = array<i64: 1, 64>}, {pipeline_mode = #tpu.pipeline_mode<synchronous>, transform_indices = @transform_9, window_bounds = array<i64: 16, 8>}, {pipeline_mode = #tpu.pipeline_mode<synchronous>, transform_indices = @transform_10, window_bounds = array<i64: 1, 8>}, {pipeline_mode = #tpu.pipeline_mode<synchronous>, transform_indices = @transform_11, window_bounds = array<i64: 9, 8>}, {pipeline_mode = #tpu.pipeline_mode<synchronous>, transform_indices = @transform_12, window_bounds = array<i64: 1, 1>}, {pipeline_mode = #tpu.pipeline_mode<synchronous>, transform_indices = @transform_13, window_bounds = array<i64: 1, 8>}, {pipeline_mode = #tpu.pipeline_mode<synchronous>, transform_indices = @transform_14, window_bounds = array<i64: 1, 1>}, {transform_indices = @transform_15, window_bounds = array<i64: 1, 8, 1>}]} {
    %c0 = arith.constant 0 : index
    %c0_0 = arith.constant 0 : index
    %c0_1 = arith.constant 0 : index
    %0 = vector.load %arg1[%c0, %c0_0, %c0_1] : memref<1x8x8xf32, #tpu.memory_space<vmem>>, vector<1x8x8xf32>
    %1 = vector.shape_cast %0 : vector<1x8x8xf32> to vector<8x8xf32>
    %c0_2 = arith.constant 0 : index
    %c0_3 = arith.constant 0 : index
    %2 = vector.load %arg2[%c0_2, %c0_3] : memref<9x8xf32, #tpu.memory_space<vmem>>, vector<9x8xf32>
    %cst = arith.constant 0.000000e+00 : f32
    %3 = vector.broadcast %cst : f32 to vector<6x6x8xf32>
    %4 = vector.extract_strided_slice %1 {offsets = [0, 0], sizes = [6, 6], strides = [1, 1]} : vector<8x8xf32> to vector<6x6xf32>
    %5 = vector.extract_strided_slice %2 {offsets = [0, 0], sizes = [1, 8], strides = [1, 1]} : vector<9x8xf32> to vector<1x8xf32>
    %6 = vector.shape_cast %4 : vector<6x6xf32> to vector<6x6x1xf32>
    %7 = vector.shape_cast %5 : vector<1x8xf32> to vector<1x1x8xf32>
    %8 = vector.broadcast %6 : vector<6x6x1xf32> to vector<6x6x8xf32>
    %9 = vector.broadcast %7 : vector<1x1x8xf32> to vector<6x6x8xf32>
    %10 = arith.mulf %8, %9 : vector<6x6x8xf32>
    %11 = arith.addf %3, %10 : vector<6x6x8xf32>
    %12 = vector.extract_strided_slice %1 {offsets = [0, 1], sizes = [6, 6], strides = [1, 1]} : vector<8x8xf32> to vector<6x6xf32>
    %13 = vector.extract_strided_slice %2 {offsets = [1, 0], sizes = [1, 8], strides = [1, 1]} : vector<9x8xf32> to vector<1x8xf32>
    %14 = vector.shape_cast %12 : vector<6x6xf32> to vector<6x6x1xf32>
    %15 = vector.shape_cast %13 : vector<1x8xf32> to vector<1x1x8xf32>
    %16 = vector.broadcast %14 : vector<6x6x1xf32> to vector<6x6x8xf32>
    %17 = vector.broadcast %15 : vector<1x1x8xf32> to vector<6x6x8xf32>
    %18 = arith.mulf %16, %17 : vector<6x6x8xf32>
    %19 = arith.addf %11, %18 : vector<6x6x8xf32>
    %20 = vector.extract_strided_slice %1 {offsets = [0, 2], sizes = [6, 6], strides = [1, 1]} : vector<8x8xf32> to vector<6x6xf32>
    %21 = vector.extract_strided_slice %2 {offsets = [2, 0], sizes = [1, 8], strides = [1, 1]} : vector<9x8xf32> to vector<1x8xf32>
    %22 = vector.shape_cast %20 : vector<6x6xf32> to vector<6x6x1xf32>
    %23 = vector.shape_cast %21 : vector<1x8xf32> to vector<1x1x8xf32>
    %24 = vector.broadcast %22 : vector<6x6x1xf32> to vector<6x6x8xf32>
    %25 = vector.broadcast %23 : vector<1x1x8xf32> to vector<6x6x8xf32>
    %26 = arith.mulf %24, %25 : vector<6x6x8xf32>
    %27 = arith.addf %19, %26 : vector<6x6x8xf32>
    %28 = vector.extract_strided_slice %1 {offsets = [1, 0], sizes = [6, 6], strides = [1, 1]} : vector<8x8xf32> to vector<6x6xf32>
    %29 = vector.extract_strided_slice %2 {offsets = [3, 0], sizes = [1, 8], strides = [1, 1]} : vector<9x8xf32> to vector<1x8xf32>
    %30 = vector.shape_cast %28 : vector<6x6xf32> to vector<6x6x1xf32>
    %31 = vector.shape_cast %29 : vector<1x8xf32> to vector<1x1x8xf32>
    %32 = vector.broadcast %30 : vector<6x6x1xf32> to vector<6x6x8xf32>
    %33 = vector.broadcast %31 : vector<1x1x8xf32> to vector<6x6x8xf32>
    %34 = arith.mulf %32, %33 : vector<6x6x8xf32>
    %35 = arith.addf %27, %34 : vector<6x6x8xf32>
    %36 = vector.extract_strided_slice %1 {offsets = [1, 1], sizes = [6, 6], strides = [1, 1]} : vector<8x8xf32> to vector<6x6xf32>
    %37 = vector.extract_strided_slice %2 {offsets = [4, 0], sizes = [1, 8], strides = [1, 1]} : vector<9x8xf32> to vector<1x8xf32>
    %38 = vector.shape_cast %36 : vector<6x6xf32> to vector<6x6x1xf32>
    %39 = vector.shape_cast %37 : vector<1x8xf32> to vector<1x1x8xf32>
    %40 = vector.broadcast %38 : vector<6x6x1xf32> to vector<6x6x8xf32>
    %41 = vector.broadcast %39 : vector<1x1x8xf32> to vector<6x6x8xf32>
    %42 = arith.mulf %40, %41 : vector<6x6x8xf32>
    %43 = arith.addf %35, %42 : vector<6x6x8xf32>
    %44 = vector.extract_strided_slice %1 {offsets = [1, 2], sizes = [6, 6], strides = [1, 1]} : vector<8x8xf32> to vector<6x6xf32>
    %45 = vector.extract_strided_slice %2 {offsets = [5, 0], sizes = [1, 8], strides = [1, 1]} : vector<9x8xf32> to vector<1x8xf32>
    %46 = vector.shape_cast %44 : vector<6x6xf32> to vector<6x6x1xf32>
    %47 = vector.shape_cast %45 : vector<1x8xf32> to vector<1x1x8xf32>
    %48 = vector.broadcast %46 : vector<6x6x1xf32> to vector<6x6x8xf32>
    %49 = vector.broadcast %47 : vector<1x1x8xf32> to vector<6x6x8xf32>
    %50 = arith.mulf %48, %49 : vector<6x6x8xf32>
    %51 = arith.addf %43, %50 : vector<6x6x8xf32>
    %52 = vector.extract_strided_slice %1 {offsets = [2, 0], sizes = [6, 6], strides = [1, 1]} : vector<8x8xf32> to vector<6x6xf32>
    %53 = vector.extract_strided_slice %2 {offsets = [6, 0], sizes = [1, 8], strides = [1, 1]} : vector<9x8xf32> to vector<1x8xf32>
    %54 = vector.shape_cast %52 : vector<6x6xf32> to vector<6x6x1xf32>
    %55 = vector.shape_cast %53 : vector<1x8xf32> to vector<1x1x8xf32>
    %56 = vector.broadcast %54 : vector<6x6x1xf32> to vector<6x6x8xf32>
    %57 = vector.broadcast %55 : vector<1x1x8xf32> to vector<6x6x8xf32>
    %58 = arith.mulf %56, %57 : vector<6x6x8xf32>
    %59 = arith.addf %51, %58 : vector<6x6x8xf32>
    %60 = vector.extract_strided_slice %1 {offsets = [2, 1], sizes = [6, 6], strides = [1, 1]} : vector<8x8xf32> to vector<6x6xf32>
    %61 = vector.extract_strided_slice %2 {offsets = [7, 0], sizes = [1, 8], strides = [1, 1]} : vector<9x8xf32> to vector<1x8xf32>
    %62 = vector.shape_cast %60 : vector<6x6xf32> to vector<6x6x1xf32>
    %63 = vector.shape_cast %61 : vector<1x8xf32> to vector<1x1x8xf32>
    %64 = vector.broadcast %62 : vector<6x6x1xf32> to vector<6x6x8xf32>
    %65 = vector.broadcast %63 : vector<1x1x8xf32> to vector<6x6x8xf32>
    %66 = arith.mulf %64, %65 : vector<6x6x8xf32>
    %67 = arith.addf %59, %66 : vector<6x6x8xf32>
    %68 = vector.extract_strided_slice %1 {offsets = [2, 2], sizes = [6, 6], strides = [1, 1]} : vector<8x8xf32> to vector<6x6xf32>
    %69 = vector.extract_strided_slice %2 {offsets = [8, 0], sizes = [1, 8], strides = [1, 1]} : vector<9x8xf32> to vector<1x8xf32>
    %70 = vector.shape_cast %68 : vector<6x6xf32> to vector<6x6x1xf32>
    %71 = vector.shape_cast %69 : vector<1x8xf32> to vector<1x1x8xf32>
    %72 = vector.broadcast %70 : vector<6x6x1xf32> to vector<6x6x8xf32>
    %73 = vector.broadcast %71 : vector<1x1x8xf32> to vector<6x6x8xf32>
    %74 = arith.mulf %72, %73 : vector<6x6x8xf32>
    %75 = arith.addf %67, %74 : vector<6x6x8xf32>
    %c0_4 = arith.constant 0 : index
    %c0_5 = arith.constant 0 : index
    %76 = vector.load %arg3[%c0_4, %c0_5] : memref<1x8xf32, #tpu.memory_space<vmem>>, vector<1x8xf32>
    %77 = vector.shape_cast %76 : vector<1x8xf32> to vector<1x1x8xf32>
    %78 = vector.broadcast %77 : vector<1x1x8xf32> to vector<6x6x8xf32>
    %79 = arith.addf %75, %78 : vector<6x6x8xf32>
    %cst_6 = arith.constant 0.000000e+00 : f32
    %80 = vector.broadcast %cst_6 : f32 to vector<6x6x8xf32>
    %81 = arith.maximumf %79, %80 : vector<6x6x8xf32>
    %82 = vector.extract_strided_slice %81 {offsets = [0, 0, 0], sizes = [1, 6, 8], strides = [1, 1, 1]} : vector<6x6x8xf32> to vector<1x6x8xf32>
    %83 = vector.shape_cast %82 : vector<1x6x8xf32> to vector<6x8xf32>
    %c0_7 = arith.constant 0 : index
    %c0_8 = arith.constant 0 : index
    %84 = vector.load %arg17[%c0_7, %c0_8] : memref<36x8xf32, #tpu.memory_space<vmem>>, vector<6x8xf32>
    tpu.vector_store %arg17[%c0_7, %c0_8], %83 {strides = array<i32>} : memref<36x8xf32, #tpu.memory_space<vmem>>, vector<6x8xf32>,
    %85 = vector.extract_strided_slice %81 {offsets = [1, 0, 0], sizes = [1, 6, 8], strides = [1, 1, 1]} : vector<6x6x8xf32> to vector<1x6x8xf32>
    %86 = vector.shape_cast %85 : vector<1x6x8xf32> to vector<6x8xf32>
    %c6 = arith.constant 6 : index
    %c0_9 = arith.constant 0 : index
    %87 = vector.load %arg17[%c6, %c0_9] : memref<36x8xf32, #tpu.memory_space<vmem>>, vector<6x8xf32>
    tpu.vector_store %arg17[%c6, %c0_9], %86 {strides = array<i32>} : memref<36x8xf32, #tpu.memory_space<vmem>>, vector<6x8xf32>,
    %88 = vector.extract_strided_slice %81 {offsets = [2, 0, 0], sizes = [1, 6, 8], strides = [1, 1, 1]} : vector<6x6x8xf32> to vector<1x6x8xf32>
    %89 = vector.shape_cast %88 : vector<1x6x8xf32> to vector<6x8xf32>
    %c12 = arith.constant 12 : index
    %c0_10 = arith.constant 0 : index
    %90 = vector.load %arg17[%c12, %c0_10] : memref<36x8xf32, #tpu.memory_space<vmem>>, vector<6x8xf32>
    tpu.vector_store %arg17[%c12, %c0_10], %89 {strides = array<i32>} : memref<36x8xf32, #tpu.memory_space<vmem>>, vector<6x8xf32>,
    %91 = vector.extract_strided_slice %81 {offsets = [3, 0, 0], sizes = [1, 6, 8], strides = [1, 1, 1]} : vector<6x6x8xf32> to vector<1x6x8xf32>
    %92 = vector.shape_cast %91 : vector<1x6x8xf32> to vector<6x8xf32>
    %c18 = arith.constant 18 : index
    %c0_11 = arith.constant 0 : index
    %93 = vector.load %arg17[%c18, %c0_11] : memref<36x8xf32, #tpu.memory_space<vmem>>, vector<6x8xf32>
    tpu.vector_store %arg17[%c18, %c0_11], %92 {strides = array<i32>} : memref<36x8xf32, #tpu.memory_space<vmem>>, vector<6x8xf32>,
    %94 = vector.extract_strided_slice %81 {offsets = [4, 0, 0], sizes = [1, 6, 8], strides = [1, 1, 1]} : vector<6x6x8xf32> to vector<1x6x8xf32>
    %95 = vector.shape_cast %94 : vector<1x6x8xf32> to vector<6x8xf32>
    %c24 = arith.constant 24 : index
    %c0_12 = arith.constant 0 : index
    %96 = vector.load %arg17[%c24, %c0_12] : memref<36x8xf32, #tpu.memory_space<vmem>>, vector<6x8xf32>
    tpu.vector_store %arg17[%c24, %c0_12], %95 {strides = array<i32>} : memref<36x8xf32, #tpu.memory_space<vmem>>, vector<6x8xf32>,
    %97 = vector.extract_strided_slice %81 {offsets = [5, 0, 0], sizes = [1, 6, 8], strides = [1, 1, 1]} : vector<6x6x8xf32> to vector<1x6x8xf32>
    %98 = vector.shape_cast %97 : vector<1x6x8xf32> to vector<6x8xf32>
    %c30 = arith.constant 30 : index
    %c0_13 = arith.constant 0 : index
    %99 = vector.load %arg17[%c30, %c0_13] : memref<36x8xf32, #tpu.memory_space<vmem>>, vector<6x8xf32>
    tpu.vector_store %arg17[%c30, %c0_13], %98 {strides = array<i32>} : memref<36x8xf32, #tpu.memory_space<vmem>>, vector<6x8xf32>,
    %c0_14 = arith.constant 0 : index
    %c0_15 = arith.constant 0 : index
    %100 = vector.load %arg17[%c0_14, %c0_15] : memref<36x8xf32, #tpu.memory_space<vmem>>, vector<36x8xf32>
    %c0_16 = arith.constant 0 : index
    %c0_17 = arith.constant 0 : index
    %101 = vector.load %arg4[%c0_16, %c0_17] : memref<8x64xf32, #tpu.memory_space<vmem>>, vector<8x64xf32>
    %cst_18 = arith.constant dense<0.000000e+00> : vector<36x64xf32>
    %102 = tpu.matmul %100, %101, %cst_18 {dimension_numbers = #tpu.dot_dimension_numbers<[1], [0], [0], [1], [0, 0, 1, 1], [], []>} : vector<36x8xf32>, vector<8x64xf32>, vector<36x64xf32> -> vector<36x64xf32>
    %c0_19 = arith.constant 0 : index
    %c0_20 = arith.constant 0 : index
    %103 = vector.load %arg6[%c0_19, %c0_20] : memref<1x64xf32, #tpu.memory_space<vmem>>, vector<1x64xf32>
    %104 = vector.broadcast %103 : vector<1x64xf32> to vector<36x64xf32>
    %105 = arith.addf %102, %104 : vector<36x64xf32>
    %c0_21 = arith.constant 0 : index
    %c0_22 = arith.constant 0 : index
    %106 = vector.load %arg18[%c0_21, %c0_22] : memref<36x64xf32, #tpu.memory_space<vmem>>, vector<36x64xf32>
    tpu.vector_store %arg18[%c0_21, %c0_22], %105 {strides = array<i32>} : memref<36x64xf32, #tpu.memory_space<vmem>>, vector<36x64xf32>,
    %c0_23 = arith.constant 0 : index
    %c0_24 = arith.constant 0 : index
    %107 = vector.load %arg5[%c0_23, %c0_24] : memref<16x64xf32, #tpu.memory_space<vmem>>, vector<16x64xf32>
    %c0_25 = arith.constant 0 : index
    %c0_26 = arith.constant 0 : index
    %108 = vector.load %arg7[%c0_25, %c0_26] : memref<16x64xf32, #tpu.memory_space<vmem>>, vector<16x64xf32>
    %c0_27 = arith.constant 0 : index
    %c0_28 = arith.constant 0 : index
    %109 = vector.load %arg8[%c0_27, %c0_28] : memref<16x64xf32, #tpu.memory_space<vmem>>, vector<16x64xf32>
    %c0_29 = arith.constant 0 : index
    %c0_30 = arith.constant 0 : index
    %110 = vector.load %arg9[%c0_29, %c0_30] : memref<1x64xf32, #tpu.memory_space<vmem>>, vector<1x64xf32>
    %cst_31 = arith.constant 0.000000e+00 : f32
    %111 = vector.broadcast %cst_31 : f32 to vector<1x16xf32>
    %c0_i32 = arith.constant 0 : i32
    %c36_i32 = arith.constant 36 : i32
    %112 = arith.addi %c0_i32, %c36_i32 : i32
    %c1_i32 = arith.constant 1 : i32
    %113:4 = scf.for %arg21 = %c0_i32 to %112 step %c1_i32 iter_args(%arg22 = %111, %arg23 = %111, %arg24 = %111, %arg25 = %111) -> (vector<1x16xf32>, vector<1x16xf32>, vector<1x16xf32>, vector<1x16xf32>)  : i32 {
      %cst_82 = arith.constant dense<0.000000e+00> : vector<1x64xf32>
      %226 = tpu.matmul %arg24, %109, %cst_82 {dimension_numbers = #tpu.dot_dimension_numbers<[1], [0], [0], [1], [0, 0, 1, 1], [], []>} : vector<1x16xf32>, vector<16x64xf32>, vector<1x64xf32> -> vector<1x64xf32>
      %227 = arith.index_cast %arg21 : i32 to index
      %c0_83 = arith.constant 0 : index
      %228 = vector.load %arg18[%227, %c0_83] : memref<36x64xf32, #tpu.memory_space<vmem>>, vector<1x64xf32>
      %cst_84 = arith.constant dense<0.000000e+00> : vector<1x64xf32>
      %229 = tpu.matmul %arg22, %107, %cst_84 {dimension_numbers = #tpu.dot_dimension_numbers<[1], [0], [0], [1], [0, 0, 1, 1], [], []>} : vector<1x16xf32>, vector<16x64xf32>, vector<1x64xf32> -> vector<1x64xf32>
      %230 = arith.addf %228, %229 : vector<1x64xf32>
      %231 = vector.extract_strided_slice %230 {offsets = [0, 0], sizes = [1, 16], strides = [1, 1]} : vector<1x64xf32> to vector<1x16xf32>
      %232 = arith.negf %231 : vector<1x16xf32>
      %233 = math.exp %232 : vector<1x16xf32>
      %cst_85 = arith.constant 1.000000e+00 : f32
      %234 = vector.broadcast %cst_85 : f32 to vector<1x16xf32>
      %235 = arith.addf %234, %233 : vector<1x16xf32>
      %236 = arith.divf %234, %235 : vector<1x16xf32>
      %237 = vector.extract_strided_slice %230 {offsets = [0, 16], sizes = [1, 16], strides = [1, 1]} : vector<1x64xf32> to vector<1x16xf32>
      %238 = arith.negf %237 : vector<1x16xf32>
      %239 = math.exp %238 : vector<1x16xf32>
      %cst_86 = arith.constant 1.000000e+00 : f32
      %240 = vector.broadcast %cst_86 : f32 to vector<1x16xf32>
      %241 = arith.addf %240, %239 : vector<1x16xf32>
      %242 = arith.divf %240, %241 : vector<1x16xf32>
      %243 = vector.extract_strided_slice %230 {offsets = [0, 32], sizes = [1, 16], strides = [1, 1]} : vector<1x64xf32> to vector<1x16xf32>
      %244 = math.tanh %243 : vector<1x16xf32>
      %245 = vector.extract_strided_slice %230 {offsets = [0, 48], sizes = [1, 16], strides = [1, 1]} : vector<1x64xf32> to vector<1x16xf32>
      %246 = arith.negf %245 : vector<1x16xf32>
      %247 = math.exp %246 : vector<1x16xf32>
      %cst_87 = arith.constant 1.000000e+00 : f32
      %248 = vector.broadcast %cst_87 : f32 to vector<1x16xf32>
      %249 = arith.addf %248, %247 : vector<1x16xf32>
      %250 = arith.divf %248, %249 : vector<1x16xf32>
      %251 = arith.mulf %242, %arg23 : vector<1x16xf32>
      %252 = arith.mulf %236, %244 : vector<1x16xf32>
      %253 = arith.addf %251, %252 : vector<1x16xf32>
      %254 = math.tanh %253 : vector<1x16xf32>
      %255 = arith.mulf %250, %254 : vector<1x16xf32>
      %cst_88 = arith.constant dense<0.000000e+00> : vector<1x64xf32>
      %256 = tpu.matmul %255, %108, %cst_88 {dimension_numbers = #tpu.dot_dimension_numbers<[1], [0], [0], [1], [0, 0, 1, 1], [], []>} : vector<1x16xf32>, vector<16x64xf32>, vector<1x64xf32> -> vector<1x64xf32>
      %257 = arith.addf %256, %226 : vector<1x64xf32>
      %258 = arith.addf %257, %110 : vector<1x64xf32>
      %259 = vector.extract_strided_slice %258 {offsets = [0, 0], sizes = [1, 16], strides = [1, 1]} : vector<1x64xf32> to vector<1x16xf32>
      %260 = arith.negf %259 : vector<1x16xf32>
      %261 = math.exp %260 : vector<1x16xf32>
      %cst_89 = arith.constant 1.000000e+00 : f32
      %262 = vector.broadcast %cst_89 : f32 to vector<1x16xf32>
      %263 = arith.addf %262, %261 : vector<1x16xf32>
      %264 = arith.divf %262, %263 : vector<1x16xf32>
      %265 = vector.extract_strided_slice %258 {offsets = [0, 16], sizes = [1, 16], strides = [1, 1]} : vector<1x64xf32> to vector<1x16xf32>
      %266 = arith.negf %265 : vector<1x16xf32>
      %267 = math.exp %266 : vector<1x16xf32>
      %cst_90 = arith.constant 1.000000e+00 : f32
      %268 = vector.broadcast %cst_90 : f32 to vector<1x16xf32>
      %269 = arith.addf %268, %267 : vector<1x16xf32>
      %270 = arith.divf %268, %269 : vector<1x16xf32>
      %271 = vector.extract_strided_slice %258 {offsets = [0, 32], sizes = [1, 16], strides = [1, 1]} : vector<1x64xf32> to vector<1x16xf32>
      %272 = math.tanh %271 : vector<1x16xf32>
      %273 = vector.extract_strided_slice %258 {offsets = [0, 48], sizes = [1, 16], strides = [1, 1]} : vector<1x64xf32> to vector<1x16xf32>
      %274 = arith.negf %273 : vector<1x16xf32>
      %275 = math.exp %274 : vector<1x16xf32>
      %cst_91 = arith.constant 1.000000e+00 : f32
      %276 = vector.broadcast %cst_91 : f32 to vector<1x16xf32>
      %277 = arith.addf %276, %275 : vector<1x16xf32>
      %278 = arith.divf %276, %277 : vector<1x16xf32>
      %279 = arith.mulf %270, %arg25 : vector<1x16xf32>
      %280 = arith.mulf %264, %272 : vector<1x16xf32>
      %281 = arith.addf %279, %280 : vector<1x16xf32>
      %282 = math.tanh %281 : vector<1x16xf32>
      %283 = arith.mulf %278, %282 : vector<1x16xf32>
      %284 = arith.index_cast %arg21 : i32 to index
      %c0_92 = arith.constant 0 : index
      %285 = vector.load %arg19[%284, %c0_92] : memref<36x16xf32, #tpu.memory_space<vmem>>, vector<1x16xf32>
      tpu.vector_store %arg19[%284, %c0_92], %283 {strides = array<i32>} : memref<36x16xf32, #tpu.memory_space<vmem>>, vector<1x16xf32>,
      scf.yield %255, %253, %283, %281 : vector<1x16xf32>, vector<1x16xf32>, vector<1x16xf32>, vector<1x16xf32>
    }
    %c36_i32_32 = arith.constant 36 : i32
    %c0_33 = arith.constant 0 : index
    %c0_34 = arith.constant 0 : index
    %114 = vector.load %arg19[%c0_33, %c0_34] : memref<36x16xf32, #tpu.memory_space<vmem>>, vector<36x16xf32>
    %c0_35 = arith.constant 0 : index
    %c0_36 = arith.constant 0 : index
    %115 = vector.load %arg10[%c0_35, %c0_36] : memref<16x8xf32, #tpu.memory_space<vmem>>, vector<16x8xf32>
    %cst_37 = arith.constant dense<0.000000e+00> : vector<36x8xf32>
    %116 = tpu.matmul %114, %115, %cst_37 {dimension_numbers = #tpu.dot_dimension_numbers<[1], [0], [0], [1], [0, 0, 1, 1], [], []>} : vector<36x16xf32>, vector<16x8xf32>, vector<36x8xf32> -> vector<36x8xf32>
    %c0_38 = arith.constant 0 : index
    %c0_39 = arith.constant 0 : index
    %117 = vector.load %arg11[%c0_38, %c0_39] : memref<1x8xf32, #tpu.memory_space<vmem>>, vector<1x8xf32>
    %118 = vector.broadcast %117 : vector<1x8xf32> to vector<36x8xf32>
    %119 = arith.addf %116, %118 : vector<36x8xf32>
    %cst_40 = arith.constant 0.000000e+00 : f32
    %120 = vector.broadcast %cst_40 : f32 to vector<10x10x8xf32>
    %c0_41 = arith.constant 0 : index
    %c0_42 = arith.constant 0 : index
    %c0_43 = arith.constant 0 : index
    %121 = vector.load %arg20[%c0_41, %c0_42, %c0_43] : memref<10x10x8xf32, #tpu.memory_space<vmem>>, vector<10x10x8xf32>
    tpu.vector_store %arg20[%c0_41, %c0_42, %c0_43], %120 {strides = array<i32>} : memref<10x10x8xf32, #tpu.memory_space<vmem>>, vector<10x10x8xf32>,
    %122 = vector.extract_strided_slice %119 {offsets = [0, 0], sizes = [6, 8], strides = [1, 1]} : vector<36x8xf32> to vector<6x8xf32>
    %c2 = arith.constant 2 : index
    %c2_44 = arith.constant 2 : index
    %c0_45 = arith.constant 0 : index
    %123 = vector.load %arg20[%c2, %c2_44, %c0_45] : memref<10x10x8xf32, #tpu.memory_space<vmem>>, vector<1x6x8xf32>
    %124 = vector.shape_cast %123 : vector<1x6x8xf32> to vector<6x8xf32>
    %125 = vector.shape_cast %122 : vector<6x8xf32> to vector<1x6x8xf32>
    tpu.vector_store %arg20[%c2, %c2_44, %c0_45], %125 {strides = array<i32>} : memref<10x10x8xf32, #tpu.memory_space<vmem>>, vector<1x6x8xf32>,
    %126 = vector.extract_strided_slice %119 {offsets = [6, 0], sizes = [6, 8], strides = [1, 1]} : vector<36x8xf32> to vector<6x8xf32>
    %c3 = arith.constant 3 : index
    %c2_46 = arith.constant 2 : index
    %c0_47 = arith.constant 0 : index
    %127 = vector.load %arg20[%c3, %c2_46, %c0_47] : memref<10x10x8xf32, #tpu.memory_space<vmem>>, vector<1x6x8xf32>
    %128 = vector.shape_cast %127 : vector<1x6x8xf32> to vector<6x8xf32>
    %129 = vector.shape_cast %126 : vector<6x8xf32> to vector<1x6x8xf32>
    tpu.vector_store %arg20[%c3, %c2_46, %c0_47], %129 {strides = array<i32>} : memref<10x10x8xf32, #tpu.memory_space<vmem>>, vector<1x6x8xf32>,
    %130 = vector.extract_strided_slice %119 {offsets = [12, 0], sizes = [6, 8], strides = [1, 1]} : vector<36x8xf32> to vector<6x8xf32>
    %c4 = arith.constant 4 : index
    %c2_48 = arith.constant 2 : index
    %c0_49 = arith.constant 0 : index
    %131 = vector.load %arg20[%c4, %c2_48, %c0_49] : memref<10x10x8xf32, #tpu.memory_space<vmem>>, vector<1x6x8xf32>
    %132 = vector.shape_cast %131 : vector<1x6x8xf32> to vector<6x8xf32>
    %133 = vector.shape_cast %130 : vector<6x8xf32> to vector<1x6x8xf32>
    tpu.vector_store %arg20[%c4, %c2_48, %c0_49], %133 {strides = array<i32>} : memref<10x10x8xf32, #tpu.memory_space<vmem>>, vector<1x6x8xf32>,
    %134 = vector.extract_strided_slice %119 {offsets = [18, 0], sizes = [6, 8], strides = [1, 1]} : vector<36x8xf32> to vector<6x8xf32>
    %c5 = arith.constant 5 : index
    %c2_50 = arith.constant 2 : index
    %c0_51 = arith.constant 0 : index
    %135 = vector.load %arg20[%c5, %c2_50, %c0_51] : memref<10x10x8xf32, #tpu.memory_space<vmem>>, vector<1x6x8xf32>
    %136 = vector.shape_cast %135 : vector<1x6x8xf32> to vector<6x8xf32>
    %137 = vector.shape_cast %134 : vector<6x8xf32> to vector<1x6x8xf32>
    tpu.vector_store %arg20[%c5, %c2_50, %c0_51], %137 {strides = array<i32>} : memref<10x10x8xf32, #tpu.memory_space<vmem>>, vector<1x6x8xf32>,
    %138 = vector.extract_strided_slice %119 {offsets = [24, 0], sizes = [6, 8], strides = [1, 1]} : vector<36x8xf32> to vector<6x8xf32>
    %c6_52 = arith.constant 6 : index
    %c2_53 = arith.constant 2 : index
    %c0_54 = arith.constant 0 : index
    %139 = vector.load %arg20[%c6_52, %c2_53, %c0_54] : memref<10x10x8xf32, #tpu.memory_space<vmem>>, vector<1x6x8xf32>
    %140 = vector.shape_cast %139 : vector<1x6x8xf32> to vector<6x8xf32>
    %141 = vector.shape_cast %138 : vector<6x8xf32> to vector<1x6x8xf32>
    tpu.vector_store %arg20[%c6_52, %c2_53, %c0_54], %141 {strides = array<i32>} : memref<10x10x8xf32, #tpu.memory_space<vmem>>, vector<1x6x8xf32>,
    %142 = vector.extract_strided_slice %119 {offsets = [30, 0], sizes = [6, 8], strides = [1, 1]} : vector<36x8xf32> to vector<6x8xf32>
    %c7 = arith.constant 7 : index
    %c2_55 = arith.constant 2 : index
    %c0_56 = arith.constant 0 : index
    %143 = vector.load %arg20[%c7, %c2_55, %c0_56] : memref<10x10x8xf32, #tpu.memory_space<vmem>>, vector<1x6x8xf32>
    %144 = vector.shape_cast %143 : vector<1x6x8xf32> to vector<6x8xf32>
    %145 = vector.shape_cast %142 : vector<6x8xf32> to vector<1x6x8xf32>
    tpu.vector_store %arg20[%c7, %c2_55, %c0_56], %145 {strides = array<i32>} : memref<10x10x8xf32, #tpu.memory_space<vmem>>, vector<1x6x8xf32>,
    %c0_57 = arith.constant 0 : index
    %c0_58 = arith.constant 0 : index
    %c0_59 = arith.constant 0 : index
    %146 = vector.load %arg20[%c0_57, %c0_58, %c0_59] : memref<10x10x8xf32, #tpu.memory_space<vmem>>, vector<10x10x8xf32>
    %c0_60 = arith.constant 0 : index
    %c0_61 = arith.constant 0 : index
    %147 = vector.load %arg12[%c0_60, %c0_61] : memref<9x8xf32, #tpu.memory_space<vmem>>, vector<9x8xf32>
    %cst_62 = arith.constant 0.000000e+00 : f32
    %148 = vector.broadcast %cst_62 : f32 to vector<8x8xf32>
    %149 = vector.extract_strided_slice %146 {offsets = [0, 0, 0], sizes = [8, 8, 8], strides = [1, 1, 1]} : vector<10x10x8xf32> to vector<8x8x8xf32>
    %150 = vector.extract_strided_slice %147 {offsets = [0, 0], sizes = [1, 8], strides = [1, 1]} : vector<9x8xf32> to vector<1x8xf32>
    %151 = vector.shape_cast %150 : vector<1x8xf32> to vector<1x1x8xf32>
    %152 = vector.broadcast %151 : vector<1x1x8xf32> to vector<8x8x8xf32>
    %153 = arith.mulf %149, %152 : vector<8x8x8xf32>
    %cst_63 = arith.constant dense<0.000000e+00> : vector<8x8xf32>
    %154 = vector.multi_reduction <add>, %153, %cst_63 [2] : vector<8x8x8xf32> to vector<8x8xf32>
    %155 = arith.addf %148, %154 : vector<8x8xf32>
    %156 = vector.extract_strided_slice %146 {offsets = [0, 1, 0], sizes = [8, 8, 8], strides = [1, 1, 1]} : vector<10x10x8xf32> to vector<8x8x8xf32>
    %157 = vector.extract_strided_slice %147 {offsets = [1, 0], sizes = [1, 8], strides = [1, 1]} : vector<9x8xf32> to vector<1x8xf32>
    %158 = vector.shape_cast %157 : vector<1x8xf32> to vector<1x1x8xf32>
    %159 = vector.broadcast %158 : vector<1x1x8xf32> to vector<8x8x8xf32>
    %160 = arith.mulf %156, %159 : vector<8x8x8xf32>
    %cst_64 = arith.constant dense<0.000000e+00> : vector<8x8xf32>
    %161 = vector.multi_reduction <add>, %160, %cst_64 [2] : vector<8x8x8xf32> to vector<8x8xf32>
    %162 = arith.addf %155, %161 : vector<8x8xf32>
    %163 = vector.extract_strided_slice %146 {offsets = [0, 2, 0], sizes = [8, 8, 8], strides = [1, 1, 1]} : vector<10x10x8xf32> to vector<8x8x8xf32>
    %164 = vector.extract_strided_slice %147 {offsets = [2, 0], sizes = [1, 8], strides = [1, 1]} : vector<9x8xf32> to vector<1x8xf32>
    %165 = vector.shape_cast %164 : vector<1x8xf32> to vector<1x1x8xf32>
    %166 = vector.broadcast %165 : vector<1x1x8xf32> to vector<8x8x8xf32>
    %167 = arith.mulf %163, %166 : vector<8x8x8xf32>
    %cst_65 = arith.constant dense<0.000000e+00> : vector<8x8xf32>
    %168 = vector.multi_reduction <add>, %167, %cst_65 [2] : vector<8x8x8xf32> to vector<8x8xf32>
    %169 = arith.addf %162, %168 : vector<8x8xf32>
    %170 = vector.extract_strided_slice %146 {offsets = [1, 0, 0], sizes = [8, 8, 8], strides = [1, 1, 1]} : vector<10x10x8xf32> to vector<8x8x8xf32>
    %171 = vector.extract_strided_slice %147 {offsets = [3, 0], sizes = [1, 8], strides = [1, 1]} : vector<9x8xf32> to vector<1x8xf32>
    %172 = vector.shape_cast %171 : vector<1x8xf32> to vector<1x1x8xf32>
    %173 = vector.broadcast %172 : vector<1x1x8xf32> to vector<8x8x8xf32>
    %174 = arith.mulf %170, %173 : vector<8x8x8xf32>
    %cst_66 = arith.constant dense<0.000000e+00> : vector<8x8xf32>
    %175 = vector.multi_reduction <add>, %174, %cst_66 [2] : vector<8x8x8xf32> to vector<8x8xf32>
    %176 = arith.addf %169, %175 : vector<8x8xf32>
    %177 = vector.extract_strided_slice %146 {offsets = [1, 1, 0], sizes = [8, 8, 8], strides = [1, 1, 1]} : vector<10x10x8xf32> to vector<8x8x8xf32>
    %178 = vector.extract_strided_slice %147 {offsets = [4, 0], sizes = [1, 8], strides = [1, 1]} : vector<9x8xf32> to vector<1x8xf32>
    %179 = vector.shape_cast %178 : vector<1x8xf32> to vector<1x1x8xf32>
    %180 = vector.broadcast %179 : vector<1x1x8xf32> to vector<8x8x8xf32>
    %181 = arith.mulf %177, %180 : vector<8x8x8xf32>
    %cst_67 = arith.constant dense<0.000000e+00> : vector<8x8xf32>
    %182 = vector.multi_reduction <add>, %181, %cst_67 [2] : vector<8x8x8xf32> to vector<8x8xf32>
    %183 = arith.addf %176, %182 : vector<8x8xf32>
    %184 = vector.extract_strided_slice %146 {offsets = [1, 2, 0], sizes = [8, 8, 8], strides = [1, 1, 1]} : vector<10x10x8xf32> to vector<8x8x8xf32>
    %185 = vector.extract_strided_slice %147 {offsets = [5, 0], sizes = [1, 8], strides = [1, 1]} : vector<9x8xf32> to vector<1x8xf32>
    %186 = vector.shape_cast %185 : vector<1x8xf32> to vector<1x1x8xf32>
    %187 = vector.broadcast %186 : vector<1x1x8xf32> to vector<8x8x8xf32>
    %188 = arith.mulf %184, %187 : vector<8x8x8xf32>
    %cst_68 = arith.constant dense<0.000000e+00> : vector<8x8xf32>
    %189 = vector.multi_reduction <add>, %188, %cst_68 [2] : vector<8x8x8xf32> to vector<8x8xf32>
    %190 = arith.addf %183, %189 : vector<8x8xf32>
    %191 = vector.extract_strided_slice %146 {offsets = [2, 0, 0], sizes = [8, 8, 8], strides = [1, 1, 1]} : vector<10x10x8xf32> to vector<8x8x8xf32>
    %192 = vector.extract_strided_slice %147 {offsets = [6, 0], sizes = [1, 8], strides = [1, 1]} : vector<9x8xf32> to vector<1x8xf32>
    %193 = vector.shape_cast %192 : vector<1x8xf32> to vector<1x1x8xf32>
    %194 = vector.broadcast %193 : vector<1x1x8xf32> to vector<8x8x8xf32>
    %195 = arith.mulf %191, %194 : vector<8x8x8xf32>
    %cst_69 = arith.constant dense<0.000000e+00> : vector<8x8xf32>
    %196 = vector.multi_reduction <add>, %195, %cst_69 [2] : vector<8x8x8xf32> to vector<8x8xf32>
    %197 = arith.addf %190, %196 : vector<8x8xf32>
    %198 = vector.extract_strided_slice %146 {offsets = [2, 1, 0], sizes = [8, 8, 8], strides = [1, 1, 1]} : vector<10x10x8xf32> to vector<8x8x8xf32>
    %199 = vector.extract_strided_slice %147 {offsets = [7, 0], sizes = [1, 8], strides = [1, 1]} : vector<9x8xf32> to vector<1x8xf32>
    %200 = vector.shape_cast %199 : vector<1x8xf32> to vector<1x1x8xf32>
    %201 = vector.broadcast %200 : vector<1x1x8xf32> to vector<8x8x8xf32>
    %202 = arith.mulf %198, %201 : vector<8x8x8xf32>
    %cst_70 = arith.constant dense<0.000000e+00> : vector<8x8xf32>
    %203 = vector.multi_reduction <add>, %202, %cst_70 [2] : vector<8x8x8xf32> to vector<8x8xf32>
    %204 = arith.addf %197, %203 : vector<8x8xf32>
    %205 = vector.extract_strided_slice %146 {offsets = [2, 2, 0], sizes = [8, 8, 8], strides = [1, 1, 1]} : vector<10x10x8xf32> to vector<8x8x8xf32>
    %206 = vector.extract_strided_slice %147 {offsets = [8, 0], sizes = [1, 8], strides = [1, 1]} : vector<9x8xf32> to vector<1x8xf32>
    %207 = vector.shape_cast %206 : vector<1x8xf32> to vector<1x1x8xf32>
    %208 = vector.broadcast %207 : vector<1x1x8xf32> to vector<8x8x8xf32>
    %209 = arith.mulf %205, %208 : vector<8x8x8xf32>
    %cst_71 = arith.constant dense<0.000000e+00> : vector<8x8xf32>
    %210 = vector.multi_reduction <add>, %209, %cst_71 [2] : vector<8x8x8xf32> to vector<8x8xf32>
    %211 = arith.addf %204, %210 : vector<8x8xf32>
    %c0_72 = arith.constant 0 : index
    %c0_73 = arith.constant 0 : index
    %212 = vector.load %arg13[%c0_72, %c0_73] : memref<1x1xf32, #tpu.memory_space<vmem>>, vector<1x1xf32>
    %213 = vector.broadcast %212 : vector<1x1xf32> to vector<8x8xf32>
    %214 = arith.addf %211, %213 : vector<8x8xf32>
    %c0_74 = arith.constant 0 : index
    %c0_75 = arith.constant 0 : index
    %215 = vector.load %arg14[%c0_74, %c0_75] : memref<1x8xf32, #tpu.memory_space<vmem>>, vector<1x8xf32>
    %216 = vector.broadcast %215 : vector<1x8xf32> to vector<8x8xf32>
    %217 = arith.mulf %214, %216 : vector<8x8xf32>
    %cst_76 = arith.constant dense<0.000000e+00> : vector<8xf32>
    %218 = vector.multi_reduction <add>, %217, %cst_76 [1] : vector<8x8xf32> to vector<8xf32>
    %219 = vector.shape_cast %218 : vector<8xf32> to vector<8x1xf32>
    %c0_77 = arith.constant 0 : index
    %c0_78 = arith.constant 0 : index
    %220 = vector.load %arg15[%c0_77, %c0_78] : memref<1x1xf32, #tpu.memory_space<vmem>>, vector<1x1xf32>
    %221 = vector.broadcast %220 : vector<1x1xf32> to vector<8x1xf32>
    %222 = arith.addf %219, %221 : vector<8x1xf32>
    %c0_79 = arith.constant 0 : index
    %c0_80 = arith.constant 0 : index
    %c0_81 = arith.constant 0 : index
    %223 = vector.load %arg16[%c0_79, %c0_80, %c0_81] : memref<1x8x1xf32, #tpu.memory_space<vmem>>, vector<1x8x1xf32>
    %224 = vector.shape_cast %223 : vector<1x8x1xf32> to vector<8x1xf32>
    %225 = vector.shape_cast %222 : vector<8x1xf32> to vector<1x8x1xf32>
    tpu.vector_store %arg16[%c0_79, %c0_80, %c0_81], %225 {strides = array<i32>} : memref<1x8x1xf32, #tpu.memory_space<vmem>>, vector<1x8x1xf32>,
    return
  }
  func.func @transform_0(%arg0: i32) -> (i32, i32, i32) {
    %c0_i32 = arith.constant 0 : i32
    %c0_i32_0 = arith.constant 0 : i32
    %c0_i32_1 = arith.constant 0 : i32
    return %arg0, %c0_i32, %c0_i32_0 : i32, i32, i32
  }
  func.func @transform_1(%arg0: i32) -> (i32, i32) {
    %c0_i32 = arith.constant 0 : i32
    %c0_i32_0 = arith.constant 0 : i32
    %c0_i32_1 = arith.constant 0 : i32
    return %c0_i32, %c0_i32_0 : i32, i32
  }
  func.func @transform_2(%arg0: i32) -> (i32, i32) {
    %c0_i32 = arith.constant 0 : i32
    %c0_i32_0 = arith.constant 0 : i32
    %c0_i32_1 = arith.constant 0 : i32
    return %c0_i32, %c0_i32_0 : i32, i32
  }
  func.func @transform_3(%arg0: i32) -> (i32, i32) {
    %c0_i32 = arith.constant 0 : i32
    %c0_i32_0 = arith.constant 0 : i32
    %c0_i32_1 = arith.constant 0 : i32
    return %c0_i32, %c0_i32_0 : i32, i32
  }
  func.func @transform_4(%arg0: i32) -> (i32, i32) {
    %c0_i32 = arith.constant 0 : i32
    %c0_i32_0 = arith.constant 0 : i32
    %c0_i32_1 = arith.constant 0 : i32
    return %c0_i32, %c0_i32_0 : i32, i32
  }
  func.func @transform_5(%arg0: i32) -> (i32, i32) {
    %c0_i32 = arith.constant 0 : i32
    %c0_i32_0 = arith.constant 0 : i32
    %c0_i32_1 = arith.constant 0 : i32
    return %c0_i32, %c0_i32_0 : i32, i32
  }
  func.func @transform_6(%arg0: i32) -> (i32, i32) {
    %c0_i32 = arith.constant 0 : i32
    %c0_i32_0 = arith.constant 0 : i32
    %c0_i32_1 = arith.constant 0 : i32
    return %c0_i32, %c0_i32_0 : i32, i32
  }
  func.func @transform_7(%arg0: i32) -> (i32, i32) {
    %c0_i32 = arith.constant 0 : i32
    %c0_i32_0 = arith.constant 0 : i32
    %c0_i32_1 = arith.constant 0 : i32
    return %c0_i32, %c0_i32_0 : i32, i32
  }
  func.func @transform_8(%arg0: i32) -> (i32, i32) {
    %c0_i32 = arith.constant 0 : i32
    %c0_i32_0 = arith.constant 0 : i32
    %c0_i32_1 = arith.constant 0 : i32
    return %c0_i32, %c0_i32_0 : i32, i32
  }
  func.func @transform_9(%arg0: i32) -> (i32, i32) {
    %c0_i32 = arith.constant 0 : i32
    %c0_i32_0 = arith.constant 0 : i32
    %c0_i32_1 = arith.constant 0 : i32
    return %c0_i32, %c0_i32_0 : i32, i32
  }
  func.func @transform_10(%arg0: i32) -> (i32, i32) {
    %c0_i32 = arith.constant 0 : i32
    %c0_i32_0 = arith.constant 0 : i32
    %c0_i32_1 = arith.constant 0 : i32
    return %c0_i32, %c0_i32_0 : i32, i32
  }
  func.func @transform_11(%arg0: i32) -> (i32, i32) {
    %c0_i32 = arith.constant 0 : i32
    %c0_i32_0 = arith.constant 0 : i32
    %c0_i32_1 = arith.constant 0 : i32
    return %c0_i32, %c0_i32_0 : i32, i32
  }
  func.func @transform_12(%arg0: i32) -> (i32, i32) {
    %c0_i32 = arith.constant 0 : i32
    %c0_i32_0 = arith.constant 0 : i32
    %c0_i32_1 = arith.constant 0 : i32
    return %c0_i32, %c0_i32_0 : i32, i32
  }
  func.func @transform_13(%arg0: i32) -> (i32, i32) {
    %c0_i32 = arith.constant 0 : i32
    %c0_i32_0 = arith.constant 0 : i32
    %c0_i32_1 = arith.constant 0 : i32
    return %c0_i32, %c0_i32_0 : i32, i32
  }
  func.func @transform_14(%arg0: i32) -> (i32, i32) {
    %c0_i32 = arith.constant 0 : i32
    %c0_i32_0 = arith.constant 0 : i32
    %c0_i32_1 = arith.constant 0 : i32
    return %c0_i32, %c0_i32_0 : i32, i32
  }
  func.func @transform_15(%arg0: i32) -> (i32, i32, i32) {
    %c0_i32 = arith.constant 0 : i32
    %c0_i32_0 = arith.constant 0 : i32
    %c0_i32_1 = arith.constant 0 : i32
    return %arg0, %c0_i32, %c0_i32_0 : i32, i32, i32
  }
}

</mosaic_0001>

<llo_original>
// kernel: net_forward.1
$region0: #{net_forward.1}
  #allocation0 [shape = 'u32[]', space=smem, size = 0x4, offset = 0x4, fixed_abs, tag = 'smem constant byte address 0x4 - core index']
  #allocation1 [shape = 'u32[72,128]{1,0:T(1,128)}', space=vmem, size = 0x9000, scoped, tag = 'internal scratch']
  #allocation2 [shape = 'f32[36,8]{1,0:T(8,128)}', space=vmem, size = 0x5000, scoped, tag = 'scratch operand']
  #allocation3 [shape = 'f32[36,64]{1,0:T(8,128)}', space=vmem, size = 0x5000, scoped, tag = 'scratch operand']
  #allocation4 [shape = 'f32[36,16]{1,0:T(8,128)}', space=vmem, size = 0x5000, scoped, tag = 'scratch operand']
  #allocation5 [shape = 'f32[10,10,8]{2,1,0:T(8,128)}', space=vmem, size = 0x14000, scoped, tag = 'scratch operand']
  #allocation6 [shape = 'f32[1,1]{1,0:T(1,128)S(1)}', space=vmem, size = 0x200, scoped, tag = 'scoped memory for net_forward.1']
  #allocation7 [shape = 'f32[1,1]{1,0:T(1,128)S(1)}', space=vmem, size = 0x200, scoped, tag = 'scoped memory for net_forward.1']
  %s0 = inlined_call_operand.vmem [shape: f32[2,8,8], index: 0, kind: input, shape index: {}]
  %s1 = inlined_call_operand.vmem [shape: f32[9,8], index: 1, kind: input, shape index: {}]
  %s2 = inlined_call_operand.hbm [shape: f32[1,8], index: 2, kind: input, shape index: {}]
  %s3 = inlined_call_operand.vmem [shape: f32[8,64], index: 3, kind: input, shape index: {}]
  %s4 = inlined_call_operand.vmem [shape: f32[16,64], index: 4, kind: input, shape index: {}]
  %s5 = inlined_call_operand.hbm [shape: f32[1,64], index: 5, kind: input, shape index: {}]
  %s6 = inlined_call_operand.vmem [shape: f32[16,64], index: 6, kind: input, shape index: {}]
  %s7 = inlined_call_operand.vmem [shape: f32[16,64], index: 7, kind: input, shape index: {}]
  %s8 = inlined_call_operand.hbm [shape: f32[1,64], index: 8, kind: input, shape index: {}]
  %s9 = inlined_call_operand.vmem [shape: f32[16,8], index: 9, kind: input, shape index: {}]
  %s10 = inlined_call_operand.vmem [shape: f32[1,8], index: 10, kind: input, shape index: {}]
  %s11 = inlined_call_operand.vmem [shape: f32[9,8], index: 11, kind: input, shape index: {}]
  %s12 = inlined_call_operand.<no memory space> [shape: f32[1,1], index: 12, kind: input, shape index: {}]
  %s13 = inlined_call_operand.vmem [shape: f32[1,8], index: 13, kind: input, shape index: {}]
  %s14 = inlined_call_operand.<no memory space> [shape: f32[1,1], index: 14, kind: input, shape index: {}]
  %s15 = inlined_call_operand.vmem [shape: f32[2,8,1], index: 15, kind: output, shape index: {}]
  %s16 = sld [smem:[#allocation0]]
  $region112: #{net_forward.1} parent=0
    _
  %s18 = ssub.s32 1, %s16
  %s19 = scalar_select 0, %s18, %s16
  %v20 = vstv %s12
  %21 = vst [vmem:[#allocation6] sm:$0x1] %v20
  %v22 = vstv %s14
  %23 = vst [vmem:[#allocation7] sm:$0x1] %v22
  $region1: #{net_forward.1} parent=0
    #allocation8 [shape = 'u8[512]{0}', space=vmem, size = 0x400, scoped, tag = 'input window, operand 2, single buffered']
    #allocation9 [shape = 's32[2]{0}', space=sflag, size = 0x8, scoped, tag = 'scoped memory for net_forward.1']
    #allocation10 [shape = 'u8[512]{0}', space=vmem, size = 0x400, scoped, tag = 'input window, operand 5, single buffered']
    #allocation11 [shape = 's32[1]{0}', space=sflag, size = 0x4, scoped, tag = 'scoped memory for net_forward.1']
    #allocation12 [shape = 'u8[512]{0}', space=vmem, size = 0x400, scoped, tag = 'input window, operand 8, single buffered']
    %24 = vsyncpa [#allocation9], 0
    %25 = vsyncpa [#allocation11], 0
    loop: start=0, step=1, limit=4
    $region2: #{net_forward.1} parent=1 // loop_pre_header
      _
    $region3: #{net_forward.1} parent=1 // loop_header
      %s27 = sphi 0, %s31
      %p28 = scmp.ge.s32.totalorder %s27, 4
      %s37 = sphi 0, %s39
      %s40 = sphi 0, %s37
      %s41 = sphi 0, %s40
      %s57 = sphi 0, %s41
      %s61 = sphi 0, %s61
      %s63 = sphi 0, %s61
      %s64 = sphi 0, %s63
      %s78 = sphi 0, %s64
      %s82 = sphi 0, %s82
      %s84 = sphi 0, %s82
      %s85 = sphi 0, %s84
      %s99 = sphi 0, %s85
      %s103 = sphi 0, %s103
      %s105 = sphi 0, %s103
      %s106 = sphi 0, %s105
      %s120 = sphi 0, %s106
      %s124 = sphi 0, %s124
      %s126 = sphi 0, %s124
      %s127 = sphi 0, %s126
      %s141 = sphi 0, %s127
      %s145 = sphi 0, %s145
      %s147 = sphi 0, %s145
      %s148 = sphi 0, %s147
      %s162 = sphi 0, %s148
      %s166 = sphi 0, %s166
      %s168 = sphi 0, %s166
      %s169 = sphi 0, %s168
      %s183 = sphi 0, %s169
      %s187 = sphi 0, %s187
      %s189 = sphi 0, %s187
      %s190 = sphi 0, %s189
      %s204 = sphi 0, %s190
      %s208 = sphi 0, %s208
      %s210 = sphi 0, %s208
      %s211 = sphi 0, %s210
      %s225 = sphi 0, %s211
      %s229 = sphi 0, %s229
      %s231 = sphi 0, %s229
      %s232 = sphi 0, %s231
      %s246 = sphi 0, %s232
      %s250 = sphi 0, %s250
      %s252 = sphi 0, %s250
      %s253 = sphi 0, %s252
      %s267 = sphi 0, %s253
      %s271 = sphi 0, %s271
      %s273 = sphi 0, %s271
      %s274 = sphi 0, %s273
      %s288 = sphi 0, %s274
      %s292 = sphi 0, %s292
      %s294 = sphi 0, %s292
      %s295 = sphi 0, %s294
      %s309 = sphi 0, %s295
      %s313 = sphi 0, %s313
      %s315 = sphi 0, %s313
      %s316 = sphi 0, %s315
      %s330 = sphi 0, %s316
      %s334 = sphi 0, %s334
      %s336 = sphi 0, %s334
      %s337 = sphi 0, %s336
      %s351 = sphi 0, %s337
      %s357 = sphi 0, %s359
      %s360 = sphi 0, %s357
      %s361 = sphi 0, %s360
      %s377 = sphi 0, %s361
    $region4: #{net_forward.1} parent=1 // loop_header_branch
      %30 = sbr.rel (%p28) target = $region8
    $region5: #{net_forward.1} parent=1 // loop_body
      %s32 = ssub.s32 %s27, 1
      %s33 = ssub.s32 %s27, 2
      %s34 = sadd.s32 %s27, 1
      %s35 = ssub.s32 %s27, %s34
      %p36 = scmp.eq.s32.totalorder %s35, 0
      %s38 = sadd.s32 %s37, 1
      %s39 = scalar_select %p36, %s37, %s38
      %p42 = pneg %p36
      %p43 = scmp.eq.s32.totalorder %s27, 1
      %p44 = por %p42, %p43
      %p45 = scmp.ne.s32.totalorder %s37, %s40
      %p46 = scmp.eq.s32.totalorder %s27, 0
      %p47 = por %p45, %p46
      %p48 = scmp.ne.s32.totalorder %s37, %s40
      %p49 = scmp.eq.s32.totalorder %s32, 1
      %p50 = por %p48, %p49
      %p51 = scmp.ne.s32.totalorder %s40, %s41
      %p52 = scmp.eq.s32.totalorder %s32, 0
      %p53 = por %p51, %p52
      %p54 = scmp.ne.s32.totalorder %s40, %s41
      %p55 = scmp.eq.s32.totalorder %s33, 1
      %p56 = por %p54, %p55
      %p58 = scmp.ne.s32.totalorder %s41, %s57
      %p59 = scmp.eq.s32.totalorder %s33, 0
      %p60 = por %p58, %p59
      %s62 = sadd.s32 %s61, 1
      %p65 = scmp.eq.s32.totalorder %s27, 1
      %p66 = scmp.ne.s32.totalorder %s61, %s63
      %p67 = scmp.eq.s32.totalorder %s27, 0
      %p68 = por %p66, %p67
      %p69 = scmp.ne.s32.totalorder %s61, %s63
      %p70 = scmp.eq.s32.totalorder %s32, 1
      %p71 = por %p69, %p70
      %p72 = scmp.ne.s32.totalorder %s63, %s64
      %p73 = scmp.eq.s32.totalorder %s32, 0
      %p74 = por %p72, %p73
      %p75 = scmp.ne.s32.totalorder %s63, %s64
      %p76 = scmp.eq.s32.totalorder %s33, 1
      %p77 = por %p75, %p76
      %p79 = scmp.ne.s32.totalorder %s64, %s78
      %p80 = scmp.eq.s32.totalorder %s33, 0
      %p81 = por %p79, %p80
      %s83 = sadd.s32 %s82, 1
      %p86 = scmp.eq.s32.totalorder %s27, 1
      %p87 = scmp.ne.s32.totalorder %s82, %s84
      %p88 = scmp.eq.s32.totalorder %s27, 0
      %p89 = por %p87, %p88
      %p90 = scmp.ne.s32.totalorder %s82, %s84
      %p91 = scmp.eq.s32.totalorder %s32, 1
      %p92 = por %p90, %p91
      %p93 = scmp.ne.s32.totalorder %s84, %s85
      %p94 = scmp.eq.s32.totalorder %s32, 0
      %p95 = por %p93, %p94
      %p96 = scmp.ne.s32.totalorder %s84, %s85
      %p97 = scmp.eq.s32.totalorder %s33, 1
      %p98 = por %p96, %p97
      %p100 = scmp.ne.s32.totalorder %s85, %s99
      %p101 = scmp.eq.s32.totalorder %s33, 0
      %p102 = por %p100, %p101
      %s104 = sadd.s32 %s103, 1
      %p107 = scmp.eq.s32.totalorder %s27, 1
      %p108 = scmp.ne.s32.totalorder %s103, %s105
      %p109 = scmp.eq.s32.totalorder %s27, 0
      %p110 = por %p108, %p109
      %p111 = scmp.ne.s32.totalorder %s103, %s105
      %p112 = scmp.eq.s32.totalorder %s32, 1
      %p113 = por %p111, %p112
      %p114 = scmp.ne.s32.totalorder %s105, %s106
      %p115 = scmp.eq.s32.totalorder %s32, 0
      %p116 = por %p114, %p115
      %p117 = scmp.ne.s32.totalorder %s105, %s106
      %p118 = scmp.eq.s32.totalorder %s33, 1
      %p119 = por %p117, %p118
      %p121 = scmp.ne.s32.totalorder %s106, %s120
      %p122 = scmp.eq.s32.totalorder %s33, 0
      %p123 = por %p121, %p122
      %s125 = sadd.s32 %s124, 1
      %p128 = scmp.eq.s32.totalorder %s27, 1
      %p129 = scmp.ne.s32.totalorder %s124, %s126
      %p130 = scmp.eq.s32.totalorder %s27, 0
      %p131 = por %p129, %p130
      %p132 = scmp.ne.s32.totalorder %s124, %s126
      %p133 = scmp.eq.s32.totalorder %s32, 1
      %p134 = por %p132, %p133
      %p135 = scmp.ne.s32.totalorder %s126, %s127
      %p136 = scmp.eq.s32.totalorder %s32, 0
      %p137 = por %p135, %p136
      %p138 = scmp.ne.s32.totalorder %s126, %s127
      %p139 = scmp.eq.s32.totalorder %s33, 1
      %p140 = por %p138, %p139
      %p142 = scmp.ne.s32.totalorder %s127, %s141
      %p143 = scmp.eq.s32.totalorder %s33, 0
      %p144 = por %p142, %p143
      %s146 = sadd.s32 %s145, 1
      %p149 = scmp.eq.s32.totalorder %s27, 1
      %p150 = scmp.ne.s32.totalorder %s145, %s147
      %p151 = scmp.eq.s32.totalorder %s27, 0
      %p152 = por %p150, %p151
      %p153 = scmp.ne.s32.totalorder %s145, %s147
      %p154 = scmp.eq.s32.totalorder %s32, 1
      %p155 = por %p153, %p154
      %p156 = scmp.ne.s32.totalorder %s147, %s148
      %p157 = scmp.eq.s32.totalorder %s32, 0
      %p158 = por %p156, %p157
      %p159 = scmp.ne.s32.totalorder %s147, %s148
      %p160 = scmp.eq.s32.totalorder %s33, 1
      %p161 = por %p159, %p160
      %p163 = scmp.ne.s32.totalorder %s148, %s162
      %p164 = scmp.eq.s32.totalorder %s33, 0
      %p165 = por %p163, %p164
      %s167 = sadd.s32 %s166, 1
      %p170 = scmp.eq.s32.totalorder %s27, 1
      %p171 = scmp.ne.s32.totalorder %s166, %s168
      %p172 = scmp.eq.s32.totalorder %s27, 0
      %p173 = por %p171, %p172
      %p174 = scmp.ne.s32.totalorder %s166, %s168
      %p175 = scmp.eq.s32.totalorder %s32, 1
      %p176 = por %p174, %p175
      %p177 = scmp.ne.s32.totalorder %s168, %s169
      %p178 = scmp.eq.s32.totalorder %s32, 0
      %p179 = por %p177, %p178
      %p180 = scmp.ne.s32.totalorder %s168, %s169
      %p181 = scmp.eq.s32.totalorder %s33, 1
      %p182 = por %p180, %p181
      %p184 = scmp.ne.s32.totalorder %s169, %s183
      %p185 = scmp.eq.s32.totalorder %s33, 0
      %p186 = por %p184, %p185
      %s188 = sadd.s32 %s187, 1
      %p191 = scmp.eq.s32.totalorder %s27, 1
      %p192 = scmp.ne.s32.totalorder %s187, %s189
      %p193 = scmp.eq.s32.totalorder %s27, 0
      %p194 = por %p192, %p193
      %p195 = scmp.ne.s32.totalorder %s187, %s189
      %p196 = scmp.eq.s32.totalorder %s32, 1
      %p197 = por %p195, %p196
      %p198 = scmp.ne.s32.totalorder %s189, %s190
      %p199 = scmp.eq.s32.totalorder %s32, 0
      %p200 = por %p198, %p199
      %p201 = scmp.ne.s32.totalorder %s189, %s190
      %p202 = scmp.eq.s32.totalorder %s33, 1
      %p203 = por %p201, %p202
      %p205 = scmp.ne.s32.totalorder %s190, %s204
      %p206 = scmp.eq.s32.totalorder %s33, 0
      %p207 = por %p205, %p206
      %s209 = sadd.s32 %s208, 1
      %p212 = scmp.eq.s32.totalorder %s27, 1
      %p213 = scmp.ne.s32.totalorder %s208, %s210
      %p214 = scmp.eq.s32.totalorder %s27, 0
      %p215 = por %p213, %p214
      %p216 = scmp.ne.s32.totalorder %s208, %s210
      %p217 = scmp.eq.s32.totalorder %s32, 1
      %p218 = por %p216, %p217
      %p219 = scmp.ne.s32.totalorder %s210, %s211
      %p220 = scmp.eq.s32.totalorder %s32, 0
      %p221 = por %p219, %p220
      %p222 = scmp.ne.s32.totalorder %s210, %s211
      %p223 = scmp.eq.s32.totalorder %s33, 1
      %p224 = por %p222, %p223
      %p226 = scmp.ne.s32.totalorder %s211, %s225
      %p227 = scmp.eq.s32.totalorder %s33, 0
      %p228 = por %p226, %p227
      %s230 = sadd.s32 %s229, 1
      %p233 = scmp.eq.s32.totalorder %s27, 1
      %p234 = scmp.ne.s32.totalorder %s229, %s231
      %p235 = scmp.eq.s32.totalorder %s27, 0
      %p236 = por %p234, %p235
      %p237 = scmp.ne.s32.totalorder %s229, %s231
      %p238 = scmp.eq.s32.totalorder %s32, 1
      %p239 = por %p237, %p238
      %p240 = scmp.ne.s32.totalorder %s231, %s232
      %p241 = scmp.eq.s32.totalorder %s32, 0
      %p242 = por %p240, %p241
      %p243 = scmp.ne.s32.totalorder %s231, %s232
      %p244 = scmp.eq.s32.totalorder %s33, 1
      %p245 = por %p243, %p244
      %p247 = scmp.ne.s32.totalorder %s232, %s246
      %p248 = scmp.eq.s32.totalorder %s33, 0
      %p249 = por %p247, %p248
      %s251 = sadd.s32 %s250, 1
      %p254 = scmp.eq.s32.totalorder %s27, 1
      %p255 = scmp.ne.s32.totalorder %s250, %s252
      %p256 = scmp.eq.s32.totalorder %s27, 0
      %p257 = por %p255, %p256
      %p258 = scmp.ne.s32.totalorder %s250, %s252
      %p259 = scmp.eq.s32.totalorder %s32, 1
      %p260 = por %p258, %p259
      %p261 = scmp.ne.s32.totalorder %s252, %s253
      %p262 = scmp.eq.s32.totalorder %s32, 0
      %p263 = por %p261, %p262
      %p264 = scmp.ne.s32.totalorder %s252, %s253
      %p265 = scmp.eq.s32.totalorder %s33, 1
      %p266 = por %p264, %p265
      %p268 = scmp.ne.s32.totalorder %s253, %s267
      %p269 = scmp.eq.s32.totalorder %s33, 0
      %p270 = por %p268, %p269
      %s272 = sadd.s32 %s271, 1
      %p275 = scmp.eq.s32.totalorder %s27, 1
      %p276 = scmp.ne.s32.totalorder %s271, %s273
      %p277 = scmp.eq.s32.totalorder %s27, 0
      %p278 = por %p276, %p277
      %p279 = scmp.ne.s32.totalorder %s271, %s273
      %p280 = scmp.eq.s32.totalorder %s32, 1
      %p281 = por %p279, %p280
      %p282 = scmp.ne.s32.totalorder %s273, %s274
      %p283 = scmp.eq.s32.totalorder %s32, 0
      %p284 = por %p282, %p283
      %p285 = scmp.ne.s32.totalorder %s273, %s274
      %p286 = scmp.eq.s32.totalorder %s33, 1
      %p287 = por %p285, %p286
      %p289 = scmp.ne.s32.totalorder %s274, %s288
      %p290 = scmp.eq.s32.totalorder %s33, 0
      %p291 = por %p289, %p290
      %s293 = sadd.s32 %s292, 1
      %p296 = scmp.eq.s32.totalorder %s27, 1
      %p297 = scmp.ne.s32.totalorder %s292, %s294
      %p298 = scmp.eq.s32.totalorder %s27, 0
      %p299 = por %p297, %p298
      %p300 = scmp.ne.s32.totalorder %s292, %s294
      %p301 = scmp.eq.s32.totalorder %s32, 1
      %p302 = por %p300, %p301
      %p303 = scmp.ne.s32.totalorder %s294, %s295
      %p304 = scmp.eq.s32.totalorder %s32, 0
      %p305 = por %p303, %p304
      %p306 = scmp.ne.s32.totalorder %s294, %s295
      %p307 = scmp.eq.s32.totalorder %s33, 1
      %p308 = por %p306, %p307
      %p310 = scmp.ne.s32.totalorder %s295, %s309
      %p311 = scmp.eq.s32.totalorder %s33, 0
      %p312 = por %p310, %p311
      %s314 = sadd.s32 %s313, 1
      %p317 = scmp.eq.s32.totalorder %s27, 1
      %p318 = scmp.ne.s32.totalorder %s313, %s315
      %p319 = scmp.eq.s32.totalorder %s27, 0
      %p320 = por %p318, %p319
      %p321 = scmp.ne.s32.totalorder %s313, %s315
      %p322 = scmp.eq.s32.totalorder %s32, 1
      %p323 = por %p321, %p322
      %p324 = scmp.ne.s32.totalorder %s315, %s316
      %p325 = scmp.eq.s32.totalorder %s32, 0
      %p326 = por %p324, %p325
      %p327 = scmp.ne.s32.totalorder %s315, %s316
      %p328 = scmp.eq.s32.totalorder %s33, 1
      %p329 = por %p327, %p328
      %p331 = scmp.ne.s32.totalorder %s316, %s330
      %p332 = scmp.eq.s32.totalorder %s33, 0
      %p333 = por %p331, %p332
      %s335 = sadd.s32 %s334, 1
      %p338 = scmp.eq.s32.totalorder %s27, 1
      %p339 = scmp.ne.s32.totalorder %s334, %s336
      %p340 = scmp.eq.s32.totalorder %s27, 0
      %p341 = por %p339, %p340
      %p342 = scmp.ne.s32.totalorder %s334, %s336
      %p343 = scmp.eq.s32.totalorder %s32, 1
      %p344 = por %p342, %p343
      %p345 = scmp.ne.s32.totalorder %s336, %s337
      %p346 = scmp.eq.s32.totalorder %s32, 0
      %p347 = por %p345, %p346
      %p348 = scmp.ne.s32.totalorder %s336, %s337
      %p349 = scmp.eq.s32.totalorder %s33, 1
      %p350 = por %p348, %p349
      %p352 = scmp.ne.s32.totalorder %s337, %s351
      %p353 = scmp.eq.s32.totalorder %s33, 0
      %p354 = por %p352, %p353
      %s355 = ssub.s32 %s27, %s34
      %p356 = scmp.eq.s32.totalorder %s355, 0
      %s358 = sadd.s32 %s357, 1
      %s359 = scalar_select %p356, %s357, %s358
      %p362 = pneg %p356
      %p363 = scmp.eq.s32.totalorder %s27, 1
      %p364 = por %p362, %p363
      %p365 = scmp.ne.s32.totalorder %s357, %s360
      %p366 = scmp.eq.s32.totalorder %s27, 0
      %p367 = por %p365, %p366
      %p368 = scmp.ne.s32.totalorder %s357, %s360
      %p369 = scmp.eq.s32.totalorder %s32, 1
      %p370 = por %p368, %p369
      %p371 = scmp.ne.s32.totalorder %s360, %s361
      %p372 = scmp.eq.s32.totalorder %s32, 0
      %p373 = por %p371, %p372
      %p374 = scmp.ne.s32.totalorder %s360, %s361
      %p375 = scmp.eq.s32.totalorder %s33, 1
      %p376 = por %p374, %p375
      %p378 = scmp.ne.s32.totalorder %s361, %s377
      %p379 = scmp.eq.s32.totalorder %s33, 0
      %p380 = por %p378, %p379
      %p381 = scmp.le.s32.totalorder 1, %s27
      %p382 = scmp.lt.s32.totalorder %s27, 3
      %p383 = pnand %p381, %p382
      %p384 = pneg %p383
      // Predicated region
      $region9: #{net_forward.1} parent=5 // pred_check
        _
      $region10: #{net_forward.1} parent=5 // pred_check_branch
        %386 = sbr.rel (%p383) target = $region12
      $region11: #{net_forward.1} parent=5 // pred_region
        %s387 = ssub.s32 %s27, 1
        // Predicated region
        $region13: #{net_forward.1} parent=11 // pred_check
          %p388 = pneg %p74
        $region14: #{net_forward.1} parent=11 // pred_check_branch
          %390 = sbr.rel (%p388) target = $region16
        $region15: #{net_forward.1} parent=11 // pred_region
          _
        $region16: #{net_forward.1} parent=11 // pred_fallthru
          _
        // Predicated region
        $region17: #{net_forward.1} parent=11 // pred_check
          %p391 = pneg %p95
        $region18: #{net_forward.1} parent=11 // pred_check_branch
          %393 = sbr.rel (%p391) target = $region20
        $region19: #{net_forward.1} parent=11 // pred_region
          %395 = vsyncadd [#allocation9], 0
          %s397 = sshll.u32 %s2, 4
          %s398 = int_to_ptr.hbm [resolvable:$true] %s397
          %s399 = sshll.u32 [#allocation8], 4
          %s400 = int_to_ptr.vmem [resolvable:$true] %s399
          %402 = dma.hbm_to_vmem [thread:$0]  %s398, 16, %s400, [#allocation9]
        $region20: #{net_forward.1} parent=11 // pred_fallthru
          _
        // Predicated region
        $region21: #{net_forward.1} parent=11 // pred_check
          %p403 = pneg %p116
        $region22: #{net_forward.1} parent=11 // pred_check_branch
          %405 = sbr.rel (%p403) target = $region24
        $region23: #{net_forward.1} parent=11 // pred_region
          _
        $region24: #{net_forward.1} parent=11 // pred_fallthru
          _
        // Predicated region
        $region25: #{net_forward.1} parent=11 // pred_check
          %p406 = pneg %p137
        $region26: #{net_forward.1} parent=11 // pred_check_branch
          %408 = sbr.rel (%p406) target = $region28
        $region27: #{net_forward.1} parent=11 // pred_region
          _
        $region28: #{net_forward.1} parent=11 // pred_fallthru
          _
        // Predicated region
        $region29: #{net_forward.1} parent=11 // pred_check
          %p409 = pneg %p158
        $region30: #{net_forward.1} parent=11 // pred_check_branch
          %411 = sbr.rel (%p409) target = $region32
        $region31: #{net_forward.1} parent=11 // pred_region
          %413 = vsyncadd [#allocation11], 0
          %s415 = sshll.u32 %s5, 4
          %s416 = int_to_ptr.hbm [resolvable:$true] %s415
          %s417 = sshll.u32 [#allocation10], 4
          %s418 = int_to_ptr.vmem [resolvable:$true] %s417
          %420 = dma.hbm_to_vmem [thread:$0]  %s416, 16, %s418, [#allocation11]
        $region32: #{net_forward.1} parent=11 // pred_fallthru
          _
        // Predicated region
        $region33: #{net_forward.1} parent=11 // pred_check
          %p421 = pneg %p179
        $region34: #{net_forward.1} parent=11 // pred_check_branch
          %423 = sbr.rel (%p421) target = $region36
        $region35: #{net_forward.1} parent=11 // pred_region
          _
        $region36: #{net_forward.1} parent=11 // pred_fallthru
          _
        // Predicated region
        $region37: #{net_forward.1} parent=11 // pred_check
          %p424 = pneg %p200
        $region38: #{net_forward.1} parent=11 // pred_check_branch
          %426 = sbr.rel (%p424) target = $region40
        $region39: #{net_forward.1} parent=11 // pred_region
          _
        $region40: #{net_forward.1} parent=11 // pred_fallthru
          _
        // Predicated region
        $region41: #{net_forward.1} parent=11 // pred_check
          %p427 = pneg %p221
        $region42: #{net_forward.1} parent=11 // pred_check_branch
          %429 = sbr.rel (%p427) target = $region44
        $region43: #{net_forward.1} parent=11 // pred_region
          %431 = vsyncadd [#allocation11], 0
          %s433 = sshll.u32 %s8, 4
          %s434 = int_to_ptr.hbm [resolvable:$true] %s433
          %s435 = sshll.u32 [#allocation12], 4
          %s436 = int_to_ptr.vmem [resolvable:$true] %s435
          %438 = dma.hbm_to_vmem [thread:$0]  %s434, 16, %s436, [#allocation11]
        $region44: #{net_forward.1} parent=11 // pred_fallthru
          _
        // Predicated region
        $region45: #{net_forward.1} parent=11 // pred_check
          %p439 = pneg %p242
        $region46: #{net_forward.1} parent=11 // pred_check_branch
          %441 = sbr.rel (%p439) target = $region48
        $region47: #{net_forward.1} parent=11 // pred_region
          _
        $region48: #{net_forward.1} parent=11 // pred_fallthru
          _
        // Predicated region
        $region49: #{net_forward.1} parent=11 // pred_check
          %p442 = pneg %p263
        $region50: #{net_forward.1} parent=11 // pred_check_branch
          %444 = sbr.rel (%p442) target = $region52
        $region51: #{net_forward.1} parent=11 // pred_region
          _
        $region52: #{net_forward.1} parent=11 // pred_fallthru
          _
        // Predicated region
        $region53: #{net_forward.1} parent=11 // pred_check
          %p445 = pneg %p284
        $region54: #{net_forward.1} parent=11 // pred_check_branch
          %447 = sbr.rel (%p445) target = $region56
        $region55: #{net_forward.1} parent=11 // pred_region
          _
        $region56: #{net_forward.1} parent=11 // pred_fallthru
          _
        // Predicated region
        $region57: #{net_forward.1} parent=11 // pred_check
          %p448 = pneg %p305
        $region58: #{net_forward.1} parent=11 // pred_check_branch
          %450 = sbr.rel (%p448) target = $region60
        $region59: #{net_forward.1} parent=11 // pred_region
          _
        $region60: #{net_forward.1} parent=11 // pred_fallthru
          _
        // Predicated region
        $region61: #{net_forward.1} parent=11 // pred_check
          %p451 = pneg %p326
        $region62: #{net_forward.1} parent=11 // pred_check_branch
          %453 = sbr.rel (%p451) target = $region64
        $region63: #{net_forward.1} parent=11 // pred_region
          _
        $region64: #{net_forward.1} parent=11 // pred_fallthru
          _
        // Predicated region
        $region65: #{net_forward.1} parent=11 // pred_check
          %p454 = pneg %p347
        $region66: #{net_forward.1} parent=11 // pred_check_branch
          %456 = sbr.rel (%p454) target = $region68
        $region67: #{net_forward.1} parent=11 // pred_region
          _
        $region68: #{net_forward.1} parent=11 // pred_fallthru
          _
      $region12: #{net_forward.1} parent=5 // pred_fallthru
        _
      %p457 = scmp.lt.s32.totalorder %s27, 2
      // Predicated region
      $region69: #{net_forward.1} parent=5 // pred_check
        %p458 = pneg %p457
      $region70: #{net_forward.1} parent=5 // pred_check_branch
        %460 = sbr.rel (%p458) target = $region72
      $region71: #{net_forward.1} parent=5 // pred_region
        // Predicated region
        $region73: #{net_forward.1} parent=71 // pred_check
          %p461 = pneg %p47
        $region74: #{net_forward.1} parent=71 // pred_check_branch
          %463 = sbr.rel (%p461) target = $region76
        $region75: #{net_forward.1} parent=71 // pred_region
          %p464 = scmp.lt.s32.totalorder %s27, 1
          %s465 = scalar_select %p464, %s27, 1
          %s466 = smul.addr %s465, 8
          %s467 = scalar_lea.vmem %s0, %s466
        $region76: #{net_forward.1} parent=71 // pred_fallthru
          _
      $region72: #{net_forward.1} parent=5 // pred_fallthru
        _
      %p468 = scmp.le.s32.totalorder 1, %s27
      %p469 = scmp.lt.s32.totalorder %s27, 3
      %p470 = pnand %p468, %p469
      %p471 = pneg %p470
      // Predicated region
      $region77: #{net_forward.1} parent=5 // pred_check
        _
      $region78: #{net_forward.1} parent=5 // pred_check_branch
        %473 = sbr.rel (%p470) target = $region80
      $region79: #{net_forward.1} parent=5 // pred_region
        %s474 = ssub.s32 %s27, 1
        // Predicated region
        $region81: #{net_forward.1} parent=79 // pred_check
          %p475 = pneg %p95
        $region82: #{net_forward.1} parent=79 // pred_check_branch
          %477 = sbr.rel (%p475) target = $region84
        $region83: #{net_forward.1} parent=79 // pred_region
          %479 = dma.done [#allocation9], 16
        $region84: #{net_forward.1} parent=79 // pred_fallthru
          _
        // Predicated region
        $region85: #{net_forward.1} parent=79 // pred_check
          %p480 = pneg %p158
        $region86: #{net_forward.1} parent=79 // pred_check_branch
          %482 = sbr.rel (%p480) target = $region88
        $region87: #{net_forward.1} parent=79 // pred_region
          %484 = dma.done [#allocation11], 16
        $region88: #{net_forward.1} parent=79 // pred_fallthru
          _
        // Predicated region
        $region89: #{net_forward.1} parent=79 // pred_check
          %p485 = pneg %p221
        $region90: #{net_forward.1} parent=79 // pred_check_branch
          %487 = sbr.rel (%p485) target = $region92
        $region91: #{net_forward.1} parent=79 // pred_region
          %489 = dma.done [#allocation11], 16
        $region92: #{net_forward.1} parent=79 // pred_fallthru
          _
        %p490 = scmp.lt.s32.totalorder %s32, 1
        %s491 = scalar_select %p490, %s32, 1
        %s492 = smul.addr %s491, 8
        %s493 = scalar_lea.vmem %s0, %s492
        %p494 = pneg %p53
        %p495 = pneg %p50
        %p496 = pneg %p74
        %p497 = pneg %p71
        %p498 = pneg %p95
        %p499 = pneg %p92
        %p500 = pneg %p116
        %p501 = pneg %p113
        %p502 = pneg %p137
        %p503 = pneg %p134
        %p504 = pneg %p158
        %p505 = pneg %p155
        %p506 = pneg %p179
        %p507 = pneg %p176
        %p508 = pneg %p200
        %p509 = pneg %p197
        %p510 = pneg %p221
        %p511 = pneg %p218
        %p512 = pneg %p242
        %p513 = pneg %p239
        %p514 = pneg %p263
        %p515 = pneg %p260
        %p516 = pneg %p284
        %p517 = pneg %p281
        %p518 = pneg %p305
        %p519 = pneg %p302
        %p520 = pneg %p326
        %p521 = pneg %p323
        %p522 = pneg %p347
        %p523 = pneg %p344
        %p524 = pneg %p373
        %p525 = pneg %p370
        %p526 = scmp.lt.s32.totalorder %s32, 1
        %s527 = scalar_select %p526, %s32, 1
        %s528 = smul.addr %s527, 8
        %s529 = scalar_lea.vmem %s15, %s528
        %p530 = scmp.lt.s32.totalorder %s32, 1
        %s531 = scalar_select %p530, %s32, 1
        %s532 = smul.addr %s531, 8
        %s533 = scalar_lea.vmem %s0, %s532
        %p534 = scmp.lt.s32.totalorder %s32, 1
        %s535 = scalar_select %p534, %s32, 1
        %s536 = smul.addr %s535, 8
        %s537 = scalar_lea.vmem %s15, %s536
        %v538 = vld [vmem:[%s533] sm:$0xff]
        %v539 = vld [vmem:[%s1] sm:$0xff]
        %v540 = vld [vmem:[%s1 + $0x8] sm:$0x1]
        %v541 = vperm.slane %v538, 0
        %v542 = vlaneseq
        %v543 = vshrl.u32 %v542, 7
        %545 = vset.pattern.permute.xlu0 %v543
        %546 = vperm.xlu0 %545, %v541
        %v547 = vpop.permute.xlu0 %546
        %v548 = vperm.slane %v538, 1
        %v549 = vlaneseq
        %v550 = vshrl.u32 %v549, 7
        %552 = vset.pattern.permute.xlu0 %v550
        %553 = vperm.xlu0 %552, %v548
        %v554 = vpop.permute.xlu0 %553
        %v555 = vperm.slane %v538, 2
        %v556 = vlaneseq
        %v557 = vshrl.u32 %v556, 7
        %559 = vset.pattern.permute.xlu0 %v557
        %560 = vperm.xlu0 %559, %v555
        %v561 = vpop.permute.xlu0 %560
        %v562 = vperm.slane %v538, 3
        %v563 = vlaneseq
        %v564 = vshrl.u32 %v563, 7
        %566 = vset.pattern.permute.xlu0 %v564
        %567 = vperm.xlu0 %566, %v562
        %v568 = vpop.permute.xlu0 %567
        %v569 = vperm.slane %v538, 4
        %v570 = vlaneseq
        %v571 = vshrl.u32 %v570, 7
        %573 = vset.pattern.permute.xlu0 %v571
        %574 = vperm.xlu0 %573, %v569
        %v575 = vpop.permute.xlu0 %574
        %v576 = vperm.slane %v538, 5
        %v577 = vlaneseq
        %v578 = vshrl.u32 %v577, 7
        %580 = vset.pattern.permute.xlu0 %v578
        %581 = vperm.xlu0 %580, %v576
        %v582 = vpop.permute.xlu0 %581
        %v583 = vperm.slane %v539, 0
        %v584 = vmul.f32 %v547, %v583
        %v585 = vmul.f32 %v554, %v583
        %v586 = vmul.f32 %v561, %v583
        %v587 = vmul.f32 %v568, %v583
        %v588 = vmul.f32 %v575, %v583
        %v589 = vmul.f32 %v582, %v583
        %v590 = vadd.f32 %v584, 0.0
        %v591 = vadd.f32 %v585, 0.0
        %v592 = vadd.f32 %v586, 0.0
        %v593 = vadd.f32 %v587, 0.0
        %v594 = vadd.f32 %v588, 0.0
        %v595 = vadd.f32 %v589, 0.0
        %v596 = vlaneseq
        %v597 = vshrl.u32 %v596, 7
        %v598 = vadd.s32 %v597, 1
        %599 = vset.pattern.permute.xlu0 %v598
        %600 = vperm.xlu0 %599, %v541
        %v601 = vpop.permute.xlu0 %600
        %v602 = vlaneseq
        %v603 = vshrl.u32 %v602, 7
        %v604 = vadd.s32 %v603, 1
        %605 = vset.pattern.permute.xlu0 %v604
        %606 = vperm.xlu0 %605, %v548
        %v607 = vpop.permute.xlu0 %606
        %v608 = vlaneseq
        %v609 = vshrl.u32 %v608, 7
        %v610 = vadd.s32 %v609, 1
        %611 = vset.pattern.permute.xlu0 %v610
        %612 = vperm.xlu0 %611, %v555
        %v613 = vpop.permute.xlu0 %612
        %v614 = vlaneseq
        %v615 = vshrl.u32 %v614, 7
        %v616 = vadd.s32 %v615, 1
        %617 = vset.pattern.permute.xlu0 %v616
        %618 = vperm.xlu0 %617, %v562
        %v619 = vpop.permute.xlu0 %618
        %v620 = vlaneseq
        %v621 = vshrl.u32 %v620, 7
        %v622 = vadd.s32 %v621, 1
        %623 = vset.pattern.permute.xlu0 %v622
        %624 = vperm.xlu0 %623, %v569
        %v625 = vpop.permute.xlu0 %624
        %v626 = vlaneseq
        %v627 = vshrl.u32 %v626, 7
        %v628 = vadd.s32 %v627, 1
        %629 = vset.pattern.permute.xlu0 %v628
        %630 = vperm.xlu0 %629, %v576
        %v631 = vpop.permute.xlu0 %630
        %v632 = vperm.slane %v539, 1
        %v633 = vmul.f32 %v601, %v632
        %v634 = vmul.f32 %v607, %v632
        %v635 = vmul.f32 %v613, %v632
        %v636 = vmul.f32 %v619, %v632
        %v637 = vmul.f32 %v625, %v632
        %v638 = vmul.f32 %v631, %v632
        %v639 = vadd.f32 %v590, %v633
        %v640 = vadd.f32 %v591, %v634
        %v641 = vadd.f32 %v592, %v635
        %v642 = vadd.f32 %v593, %v636
        %v643 = vadd.f32 %v594, %v637
        %v644 = vadd.f32 %v595, %v638
        %v645 = vlaneseq
        %v646 = vshrl.u32 %v645, 7
        %v647 = vadd.s32 %v646, 2
        %648 = vset.pattern.permute.xlu0 %v647
        %649 = vperm.xlu0 %648, %v541
        %v650 = vpop.permute.xlu0 %649
        %v651 = vlaneseq
        %v652 = vshrl.u32 %v651, 7
        %v653 = vadd.s32 %v652, 2
        %654 = vset.pattern.permute.xlu0 %v653
        %655 = vperm.xlu0 %654, %v548
        %v656 = vpop.permute.xlu0 %655
        %v657 = vlaneseq
        %v658 = vshrl.u32 %v657, 7
        %v659 = vadd.s32 %v658, 2
        %660 = vset.pattern.permute.xlu0 %v659
        %661 = vperm.xlu0 %660, %v555
        %v662 = vpop.permute.xlu0 %661
        %v663 = vlaneseq
        %v664 = vshrl.u32 %v663, 7
        %v665 = vadd.s32 %v664, 2
        %666 = vset.pattern.permute.xlu0 %v665
        %667 = vperm.xlu0 %666, %v562
        %v668 = vpop.permute.xlu0 %667
        %v669 = vlaneseq
        %v670 = vshrl.u32 %v669, 7
        %v671 = vadd.s32 %v670, 2
        %672 = vset.pattern.permute.xlu0 %v671
        %673 = vperm.xlu0 %672, %v569
        %v674 = vpop.permute.xlu0 %673
        %v675 = vlaneseq
        %v676 = vshrl.u32 %v675, 7
        %v677 = vadd.s32 %v676, 2
        %678 = vset.pattern.permute.xlu0 %v677
        %679 = vperm.xlu0 %678, %v576
        %v680 = vpop.permute.xlu0 %679
        %v681 = vperm.slane %v539, 2
        %v682 = vmul.f32 %v650, %v681
        %v683 = vmul.f32 %v656, %v681
        %v684 = vmul.f32 %v662, %v681
        %v685 = vmul.f32 %v668, %v681
        %v686 = vmul.f32 %v674, %v681
        %v687 = vmul.f32 %v680, %v681
        %v688 = vadd.f32 %v639, %v682
        %v689 = vadd.f32 %v640, %v683
        %v690 = vadd.f32 %v641, %v684
        %v691 = vadd.f32 %v642, %v685
        %v692 = vadd.f32 %v643, %v686
        %v693 = vadd.f32 %v644, %v687
        %v694 = vperm.slane %v538, 6
        %v695 = vlaneseq
        %v696 = vshrl.u32 %v695, 7
        %698 = vset.pattern.permute.xlu0 %v696
        %699 = vperm.xlu0 %698, %v694
        %v700 = vpop.permute.xlu0 %699
        %v701 = vperm.slane %v539, 3
        %v702 = vmul.f32 %v554, %v701
        %v703 = vmul.f32 %v561, %v701
        %v704 = vmul.f32 %v568, %v701
        %v705 = vmul.f32 %v575, %v701
        %v706 = vmul.f32 %v582, %v701
        %v707 = vmul.f32 %v700, %v701
        %v708 = vadd.f32 %v688, %v702
        %v709 = vadd.f32 %v689, %v703
        %v710 = vadd.f32 %v690, %v704
        %v711 = vadd.f32 %v691, %v705
        %v712 = vadd.f32 %v692, %v706
        %v713 = vadd.f32 %v693, %v707
        %v714 = vlaneseq
        %v715 = vshrl.u32 %v714, 7
        %v716 = vadd.s32 %v715, 1
        %717 = vset.pattern.permute.xlu0 %v716
        %718 = vperm.xlu0 %717, %v694
        %v719 = vpop.permute.xlu0 %718
        %v720 = vperm.slane %v539, 4
        %v721 = vmul.f32 %v607, %v720
        %v722 = vmul.f32 %v613, %v720
        %v723 = vmul.f32 %v619, %v720
        %v724 = vmul.f32 %v625, %v720
        %v725 = vmul.f32 %v631, %v720
        %v726 = vmul.f32 %v719, %v720
        %v727 = vadd.f32 %v708, %v721
        %v728 = vadd.f32 %v709, %v722
        %v729 = vadd.f32 %v710, %v723
        %v730 = vadd.f32 %v711, %v724
        %v731 = vadd.f32 %v712, %v725
        %v732 = vadd.f32 %v713, %v726
        %v733 = vlaneseq
        %v734 = vshrl.u32 %v733, 7
        %v735 = vadd.s32 %v734, 2
        %736 = vset.pattern.permute.xlu0 %v735
        %737 = vperm.xlu0 %736, %v694
        %v738 = vpop.permute.xlu0 %737
        %v739 = vperm.slane %v539, 5
        %v740 = vmul.f32 %v656, %v739
        %v741 = vmul.f32 %v662, %v739
        %v742 = vmul.f32 %v668, %v739
        %v743 = vmul.f32 %v674, %v739
        %v744 = vmul.f32 %v680, %v739
        %v745 = vmul.f32 %v738, %v739
        %v746 = vadd.f32 %v727, %v740
        %v747 = vadd.f32 %v728, %v741
        %v748 = vadd.f32 %v729, %v742
        %v749 = vadd.f32 %v730, %v743
        %v750 = vadd.f32 %v731, %v744
        %v751 = vadd.f32 %v732, %v745
        %v752 = vperm.slane %v538, 7
        %v753 = vlaneseq
        %v754 = vshrl.u32 %v753, 7
        %756 = vset.pattern.permute.xlu0 %v754
        %757 = vperm.xlu0 %756, %v752
        %v758 = vpop.permute.xlu0 %757
        %v759 = vperm.slane %v539, 6
        %v760 = vmul.f32 %v561, %v759
        %v761 = vmul.f32 %v568, %v759
        %v762 = vmul.f32 %v575, %v759
        %v763 = vmul.f32 %v582, %v759
        %v764 = vmul.f32 %v700, %v759
        %v765 = vmul.f32 %v758, %v759
        %v766 = vadd.f32 %v746, %v760
        %v767 = vadd.f32 %v747, %v761
        %v768 = vadd.f32 %v748, %v762
        %v769 = vadd.f32 %v749, %v763
        %v770 = vadd.f32 %v750, %v764
        %v771 = vadd.f32 %v751, %v765
        %v772 = vlaneseq
        %v773 = vshrl.u32 %v772, 7
        %v774 = vadd.s32 %v773, 1
        %775 = vset.pattern.permute.xlu0 %v774
        %776 = vperm.xlu0 %775, %v752
        %v777 = vpop.permute.xlu0 %776
        %v778 = vperm.slane %v539, 7
        %v779 = vmul.f32 %v613, %v778
        %v780 = vmul.f32 %v619, %v778
        %v781 = vmul.f32 %v625, %v778
        %v782 = vmul.f32 %v631, %v778
        %v783 = vmul.f32 %v719, %v778
        %v784 = vmul.f32 %v777, %v778
        %v785 = vadd.f32 %v766, %v779
        %v786 = vadd.f32 %v767, %v780
        %v787 = vadd.f32 %v768, %v781
        %v788 = vadd.f32 %v769, %v782
        %v789 = vadd.f32 %v770, %v783
        %v790 = vadd.f32 %v771, %v784
        %v791 = vlaneseq
        %v792 = vshrl.u32 %v791, 7
        %v793 = vadd.s32 %v792, 2
        %794 = vset.pattern.permute.xlu0 %v793
        %795 = vperm.xlu0 %794, %v752
        %v796 = vpop.permute.xlu0 %795
        %v797 = vperm.slane %v540, 0
        %v798 = vmul.f32 %v662, %v797
        %v799 = vmul.f32 %v668, %v797
        %v800 = vmul.f32 %v674, %v797
        %v801 = vmul.f32 %v680, %v797
        %v802 = vmul.f32 %v738, %v797
        %v803 = vmul.f32 %v796, %v797
        %v804 = vadd.f32 %v785, %v798
        %v805 = vadd.f32 %v786, %v799
        %v806 = vadd.f32 %v787, %v800
        %v807 = vadd.f32 %v788, %v801
        %v808 = vadd.f32 %v789, %v802
        %v809 = vadd.f32 %v790, %v803
        %v810 = vld [vmem:[#allocation8] sm:$0x1]
        %v812 = vperm.slane %v810, 0
        %v814 = vadd.f32 %v804, %v812
        %v815 = vadd.f32 %v805, %v812
        %v816 = vadd.f32 %v806, %v812
        %v817 = vadd.f32 %v807, %v812
        %v818 = vadd.f32 %v808, %v812
        %v819 = vadd.f32 %v809, %v812
        %v820 = vmax.f32 %v814, 0.0
        %v821 = vmax.f32 %v815, 0.0
        %v822 = vmax.f32 %v816, 0.0
        %v823 = vmax.f32 %v817, 0.0
        %v824 = vmax.f32 %v818, 0.0
        %v825 = vmax.f32 %v819, 0.0
        %vm826 = vcmask 62464
        %827 = vst.msk [vmem:[#allocation2] sm:$0x3f] %vm826, %v820
        %828 = vst.msk [vmem:[#allocation2 + $0x6] sm:$0x3f] %vm826, %v821
        %829 = vst.msk [vmem:[#allocation2 + $0xc] sm:$0x3f] %vm826, %v822
        %830 = vst.msk [vmem:[#allocation2 + $0x12] sm:$0x3f] %vm826, %v823
        %831 = vst.msk [vmem:[#allocation2 + $0x18] sm:$0x3f] %vm826, %v824
        %832 = vst.msk [vmem:[#allocation2 + $0x1e] sm:$0x3f] %vm826, %v825
        %v833 = vld [vmem:[#allocation2] sm:$0xff]
        %v834 = vld [vmem:[#allocation2 + $0x8] sm:$0xff]
        %v835 = vld [vmem:[#allocation2 + $0x10] sm:$0xff]
        %v836 = vld [vmem:[#allocation2 + $0x18] sm:$0xff]
        %v837 = vld [vmem:[#allocation2 + $0x20] sm:$0xf]
        %v838 = vld [vmem:[%s3] sm:$0xff]
        %v839 = vld [vmem:[#allocation10] sm:$0x1]
        %v841 = vperm.slane %v839, 0
        %vm843 = vcmask 64512
        %v845 = vsel %vm843, %v833, 0
        %v848 = vsel %vm843, %v834, 0
        %v851 = vsel %vm843, %v835, 0
        %v854 = vsel %vm843, %v836, 0
        %v857 = vsel %vm843, %v837, 0
        %859 = vmatpush.msra.mxu0 0.0
        %860 = vmatpush.msra.mxu0 0.0
        %861 = vmatpush.msra.mxu0 0.0
        %862 = vmatpush.msra.mxu0 0.0
        %863 = vmatpush.msra.mxu0 0.0
        %864 = vmatpush.msra.mxu0 0.0
        %865 = vmatpush.msra.mxu0 0.0
        %866 = vmatpush.msra.mxu0 0.0
        %867 = vmatpush.msra.mxu0 0.0
        %868 = vmatpush.msra.mxu0 0.0
        %869 = vmatpush.msra.mxu0 0.0
        %870 = vmatpush.msra.mxu0 0.0
        %871 = vmatpush.msra.mxu0 0.0
        %872 = vmatpush.msra.mxu0 0.0
        %873 = vmatpush.msra.mxu0 0.0
        %874 = vmatpush.msra.mxu0 %v838
        %875 = vmatmul.f32.gmra.mxu0 %v845
        %v876 = vpop.f32.mrf.mxu0
        %v877 = vadd.f32 %v841, %v876
        %878 = vmatmul.f32.gmra.mxu0 %v848
        %v879 = vpop.f32.mrf.mxu0
        %v880 = vadd.f32 %v841, %v879
        %881 = vmatmul.f32.gmra.mxu0 %v851
        %v882 = vpop.f32.mrf.mxu0
        %v883 = vadd.f32 %v841, %v882
        %884 = vmatmul.f32.gmra.mxu0 %v854
        %v885 = vpop.f32.mrf.mxu0
        %v886 = vadd.f32 %v841, %v885
        %887 = vmatmul.f32.gmra.mxu0 %v857
        %v888 = vpop.f32.mrf.mxu0
        %v889 = vadd.f32 %v841, %v888
        %890 = vdwg.mxu0
        %vm891 = vcmask 523264
        %892 = vst.msk [vmem:[#allocation3] sm:$0xff] %vm891, %v877
        %893 = vst.msk [vmem:[#allocation3 + $0x8] sm:$0xff] %vm891, %v880
        %894 = vst.msk [vmem:[#allocation3 + $0x10] sm:$0xff] %vm891, %v883
        %895 = vst.msk [vmem:[#allocation3 + $0x18] sm:$0xff] %vm891, %v886
        %vm896 = vcmask 519168
        %897 = vst.msk [vmem:[#allocation3 + $0x20] sm:$0xf] %vm896, %v889
        %v898 = vld [vmem:[%s4] sm:$0xff]
        %v899 = vld [vmem:[%s4 + $0x8] sm:$0xff]
        %v900 = vld [vmem:[%s6] sm:$0xff]
        %v901 = vld [vmem:[%s6 + $0x8] sm:$0xff]
        %v902 = vld [vmem:[%s7] sm:$0xff]
        %v903 = vld [vmem:[%s7 + $0x8] sm:$0xff]
        %v904 = vld [vmem:[#allocation12] sm:$0x1]
        loop: start=0, step=1, limit=36
        $region93: #{net_forward.1} parent=79 // loop_pre_header
          _
        $region94: #{net_forward.1} parent=79 // loop_header
          %s906 = sphi 0, %s910
          %p907 = scmp.ge.s32.totalorder %s906, 36
          %v911 = vphi 0.0, %v1005
          %v912 = vphi 0.0, %v999
          %v913 = vphi 0.0, %v1068
          %v914 = vphi 0.0, %v1062
        $region95: #{net_forward.1} parent=79 // loop_header_branch
          %909 = sbr.rel (%p907) target = $region99
        $region96: #{net_forward.1} parent=79 // loop_body
          %916 = vrot.lane.b32.xlu0 %v913, 80
          %v917 = vpop.permute.xlu0 %916
          %vm918 = vcmask 130048
          %v919 = vsel %vm918, %v917, 0
          %921 = vmatpush.msra.mxu0 0.0
          %922 = vmatpush.msra.mxu0 0.0
          %923 = vmatpush.msra.mxu0 0.0
          %924 = vmatpush.msra.mxu0 0.0
          %925 = vmatpush.msra.mxu0 0.0
          %926 = vmatpush.msra.mxu0 0.0
          %927 = vmatpush.msra.mxu0 0.0
          %928 = vmatpush.msra.mxu0 0.0
          %929 = vmatpush.msra.mxu0 0.0
          %930 = vmatpush.msra.mxu0 0.0
          %931 = vmatpush.msra.mxu0 0.0
          %932 = vmatpush.msra.mxu0 0.0
          %933 = vmatpush.msra.mxu0 0.0
          %934 = vmatpush.msra.mxu0 0.0
          %935 = vmatpush.msra.mxu0 %v903
          %936 = vmatpush.msra.mxu0 %v902
          %937 = vmatmul.f32.gmra.mxu0 %v919
          %v938 = vpop.f32.mrf.mxu0
          %v939 = vadd.f32 0.0, %v938
          %940 = vdwg.mxu0
          %s941 = scalar_lea.vmem [#allocation3], %s906
          %v942 = vld [vmem:[%s941] sm:$0x1]
          %944 = vrot.lane.b32.xlu0 %v911, 80
          %v945 = vpop.permute.xlu0 %944
          %v946 = vsel %vm918, %v945, 0
          %948 = vmatpush.msra.mxu0 0.0
          %949 = vmatpush.msra.mxu0 0.0
          %950 = vmatpush.msra.mxu0 0.0
          %951 = vmatpush.msra.mxu0 0.0
          %952 = vmatpush.msra.mxu0 0.0
          %953 = vmatpush.msra.mxu0 0.0
          %954 = vmatpush.msra.mxu0 0.0
          %955 = vmatpush.msra.mxu0 0.0
          %956 = vmatpush.msra.mxu0 0.0
          %957 = vmatpush.msra.mxu0 0.0
          %958 = vmatpush.msra.mxu0 0.0
          %959 = vmatpush.msra.mxu0 0.0
          %960 = vmatpush.msra.mxu0 0.0
          %961 = vmatpush.msra.mxu0 0.0
          %962 = vmatpush.msra.mxu0 %v899
          %963 = vmatpush.msra.mxu0 %v898
          %964 = vmatmul.f32.gmra.mxu0 %v946
          %v965 = vpop.f32.mrf.mxu0
          %v966 = vadd.f32 0.0, %v965
          %967 = vdwg.mxu0
          %v968 = vadd.f32 %v942, %v966
          %v969 = vxor.u32 %v968, 2147483648
          %v970 = vmul.f32 %v969, 1.442695
          %v971 = vpow.pop %v970
          %v972 = vadd.f32 %v971, 1.0
          %v973 = vrcp.pop %v972
          %v974 = vmul.f32 %v972, %v973
          %v975 = vsub.f32 1.0, %v974
          %v976 = vmul.f32 %v973, %v975
          %v977 = vadd.f32 %v973, %v976
          %vm978 = vweird.f32 %v972
          %vm979 = vweird.f32 %v973
          %vm980 = vmor %vm978, %vm979
          %v981 = vsel %vm980, %v973, %v977
          %v982 = vand.u32 2147483647, %v972
          %vm983 = vcmp.eq.f32.partialorder %v982, 8.507059e+37
          %v984 = vand.u32 %v972, 2147483648
          %v985 = vor.u32 1.1754944e-38, %v984
          %v986 = vsel %vm983, %v985, %v981
          %v987 = vmul.f32 1.0, %v986
          %v988 = vtanh.pop %v968
          %v989 = vmul.f32 %v987, %v912
          %991 = vrot.lane.b32.xlu0 %v988, 96
          %v992 = vpop.permute.xlu0 %991
          %v994 = vmul.f32 %v987, %v992
          %996 = vrot.lane.b32.xlu0 %v994, 16
          %v997 = vpop.permute.xlu0 %996
          %v999 = vadd.f32 %v989, %v997
          %v1000 = vtanh.pop %v999
          %1002 = vrot.lane.b32.xlu0 %v1000, 32
          %v1003 = vpop.permute.xlu0 %1002
          %v1005 = vmul.f32 %v987, %v1003
          %1007 = vrot.lane.b32.xlu0 %v1005, 80
          %v1008 = vpop.permute.xlu0 %1007
          %v1009 = vsel %vm918, %v1008, 0
          %1011 = vmatpush.msra.mxu0 0.0
          %1012 = vmatpush.msra.mxu0 0.0
          %1013 = vmatpush.msra.mxu0 0.0
          %1014 = vmatpush.msra.mxu0 0.0
          %1015 = vmatpush.msra.mxu0 0.0
          %1016 = vmatpush.msra.mxu0 0.0
          %1017 = vmatpush.msra.mxu0 0.0
          %1018 = vmatpush.msra.mxu0 0.0
          %1019 = vmatpush.msra.mxu0 0.0
          %1020 = vmatpush.msra.mxu0 0.0
          %1021 = vmatpush.msra.mxu0 0.0
          %1022 = vmatpush.msra.mxu0 0.0
          %1023 = vmatpush.msra.mxu0 0.0
          %1024 = vmatpush.msra.mxu0 0.0
          %1025 = vmatpush.msra.mxu0 %v901
          %1026 = vmatpush.msra.mxu0 %v900
          %1027 = vmatmul.f32.gmra.mxu0 %v1009
          %v1028 = vpop.f32.mrf.mxu0
          %v1029 = vadd.f32 %v939, %v1028
          %1030 = vdwg.mxu0
          %v1031 = vadd.f32 %v1029, %v904
          %v1032 = vxor.u32 %v1031, 2147483648
          %v1033 = vmul.f32 %v1032, 1.442695
          %v1034 = vpow.pop %v1033
          %v1035 = vadd.f32 %v1034, 1.0
          %v1036 = vrcp.pop %v1035
          %v1037 = vmul.f32 %v1035, %v1036
          %v1038 = vsub.f32 1.0, %v1037
          %v1039 = vmul.f32 %v1036, %v1038
          %v1040 = vadd.f32 %v1036, %v1039
          %vm1041 = vweird.f32 %v1035
          %vm1042 = vweird.f32 %v1036
          %vm1043 = vmor %vm1041, %vm1042
          %v1044 = vsel %vm1043, %v1036, %v1040
          %v1045 = vand.u32 2147483647, %v1035
          %vm1046 = vcmp.eq.f32.partialorder %v1045, 8.507059e+37
          %v1047 = vand.u32 %v1035, 2147483648
          %v1048 = vor.u32 1.1754944e-38, %v1047
          %v1049 = vsel %vm1046, %v1048, %v1044
          %v1050 = vmul.f32 1.0, %v1049
          %v1051 = vtanh.pop %v1031
          %v1052 = vmul.f32 %v1050, %v914
          %1054 = vrot.lane.b32.xlu0 %v1051, 96
          %v1055 = vpop.permute.xlu0 %1054
          %v1057 = vmul.f32 %v1050, %v1055
          %1059 = vrot.lane.b32.xlu0 %v1057, 16
          %v1060 = vpop.permute.xlu0 %1059
          %v1062 = vadd.f32 %v1052, %v1060
          %v1063 = vtanh.pop %v1062
          %1065 = vrot.lane.b32.xlu0 %v1063, 32
          %v1066 = vpop.permute.xlu0 %1065
          %v1068 = vmul.f32 %v1050, %v1066
          %1070 = vrot.lane.b32.xlu0 %v1068, 80
          %v1071 = vpop.permute.xlu0 %1070
          %s1073 = scalar_lea.vmem [#allocation4], %s906
          %vm1074 = vcmask 122880
          %1075 = vst.msk [vmem:[%s1073] sm:$0x1] %vm1074, %v1071
        $region97: #{net_forward.1} parent=79 // loop_footer
          %s910 = sadd.s32 1, %s906
        $region98: #{net_forward.1} parent=79 // loop_footer_branch
          %905 = sbr.rel target = $region94
        $region99: #{net_forward.1} parent=79 // loop_exit
          _
        %v1076 = vld [vmem:[#allocation4] sm:$0xff]
        %v1077 = vld [vmem:[#allocation4 + $0x8] sm:$0xff]
        %v1078 = vld [vmem:[#allocation4 + $0x10] sm:$0xff]
        %v1079 = vld [vmem:[#allocation4 + $0x18] sm:$0xff]
        %v1080 = vld [vmem:[#allocation4 + $0x20] sm:$0xf]
        %v1081 = vld [vmem:[%s9] sm:$0xff]
        %v1082 = vld [vmem:[%s9 + $0x8] sm:$0xff]
        %v1083 = vld [vmem:[%s10] sm:$0x1]
        %v1085 = vperm.slane %v1083, 0
        %vm1087 = vcmask 130048
        %v1089 = vsel %vm1087, %v1076, 0
        %v1092 = vsel %vm1087, %v1077, 0
        %v1095 = vsel %vm1087, %v1078, 0
        %v1098 = vsel %vm1087, %v1079, 0
        %v1101 = vsel %vm1087, %v1080, 0
        %1103 = vmatpush.msra.mxu0 0.0
        %1104 = vmatpush.msra.mxu0 0.0
        %1105 = vmatpush.msra.mxu0 0.0
        %1106 = vmatpush.msra.mxu0 0.0
        %1107 = vmatpush.msra.mxu0 0.0
        %1108 = vmatpush.msra.mxu0 0.0
        %1109 = vmatpush.msra.mxu0 0.0
        %1110 = vmatpush.msra.mxu0 0.0
        %1111 = vmatpush.msra.mxu0 0.0
        %1112 = vmatpush.msra.mxu0 0.0
        %1113 = vmatpush.msra.mxu0 0.0
        %1114 = vmatpush.msra.mxu0 0.0
        %1115 = vmatpush.msra.mxu0 0.0
        %1116 = vmatpush.msra.mxu0 0.0
        %1117 = vmatpush.msra.mxu0 %v1082
        %1118 = vmatpush.msra.mxu0 %v1081
        %1119 = vmatmul.f32.gmra.mxu0 %v1089
        %v1120 = vpop.f32.mrf.mxu0
        %v1121 = vadd.f32 %v1085, %v1120
        %1122 = vmatmul.f32.gmra.mxu0 %v1092
        %v1123 = vpop.f32.mrf.mxu0
        %v1124 = vadd.f32 %v1085, %v1123
        %1125 = vmatmul.f32.gmra.mxu0 %v1095
        %v1126 = vpop.f32.mrf.mxu0
        %v1127 = vadd.f32 %v1085, %v1126
        %1128 = vmatmul.f32.gmra.mxu0 %v1098
        %v1129 = vpop.f32.mrf.mxu0
        %v1130 = vadd.f32 %v1085, %v1129
        %1131 = vmatmul.f32.gmra.mxu0 %v1101
        %v1132 = vpop.f32.mrf.mxu0
        %v1133 = vadd.f32 %v1085, %v1132
        %1134 = vdwg.mxu0
        %1135 = vst.msk [vmem:[#allocation5] sm:$0xff] %vm843, 0.0
        %vm1136 = vcmask 58368
        %1137 = vst.msk [vmem:[#allocation5 + $0x8] sm:$0x3] %vm1136, 0.0
        %1138 = vst.msk [vmem:[#allocation5 + $0x10] sm:$0xff] %vm843, 0.0
        %1139 = vst.msk [vmem:[#allocation5 + $0x18] sm:$0x3] %vm1136, 0.0
        %1140 = vst.msk [vmem:[#allocation5 + $0x20] sm:$0xff] %vm843, 0.0
        %1141 = vst.msk [vmem:[#allocation5 + $0x28] sm:$0x3] %vm1136, 0.0
        %1142 = vst.msk [vmem:[#allocation5 + $0x30] sm:$0xff] %vm843, 0.0
        %1143 = vst.msk [vmem:[#allocation5 + $0x38] sm:$0x3] %vm1136, 0.0
        %1144 = vst.msk [vmem:[#allocation5 + $0x40] sm:$0xff] %vm843, 0.0
        %1145 = vst.msk [vmem:[#allocation5 + $0x48] sm:$0x3] %vm1136, 0.0
        %1146 = vst.msk [vmem:[#allocation5 + $0x50] sm:$0xff] %vm843, 0.0
        %1147 = vst.msk [vmem:[#allocation5 + $0x58] sm:$0x3] %vm1136, 0.0
        %1148 = vst.msk [vmem:[#allocation5 + $0x60] sm:$0xff] %vm843, 0.0
        %1149 = vst.msk [vmem:[#allocation5 + $0x68] sm:$0x3] %vm1136, 0.0
        %1150 = vst.msk [vmem:[#allocation5 + $0x70] sm:$0xff] %vm843, 0.0
        %1151 = vst.msk [vmem:[#allocation5 + $0x78] sm:$0x3] %vm1136, 0.0
        %1152 = vst.msk [vmem:[#allocation5 + $0x80] sm:$0xff] %vm843, 0.0
        %1153 = vst.msk [vmem:[#allocation5 + $0x88] sm:$0x3] %vm1136, 0.0
        %1154 = vst.msk [vmem:[#allocation5 + $0x90] sm:$0xff] %vm843, 0.0
        %1155 = vst.msk [vmem:[#allocation5 + $0x98] sm:$0x3] %vm1136, 0.0
        %s1156 = scalar_lea.vmem [#allocation5], 32
        %1157 = vst.msk [vmem:[%s1156 + $0x2] sm:$0x3f] %vm826, %v1121
        %s1158 = scalar_lea.vmem [#allocation5], 48
        %vm1159 = vcmask 64518
        %1160 = vst.msk [vmem:[%s1158 - $0x4] sm:$0xc0] %vm1159, %v1121
        %vm1161 = vcmask 60416
        %1162 = vst.msk [vmem:[%s1158 + $0x4] sm:$0xf] %vm1161, %v1124
        %s1163 = scalar_lea.vmem [#allocation5], 64
        %vm1164 = vcmask 64516
        %1165 = vst.msk [vmem:[%s1163 - $0x2] sm:$0xf0] %vm1164, %v1124
        %1166 = vst.msk [vmem:[%s1163 + $0x6] sm:$0x3] %vm1136, %v1127
        %s1167 = scalar_lea.vmem [#allocation5], 80
        %vm1168 = vcmask 64514
        %1169 = vst.msk [vmem:[%s1167] sm:$0xfc] %vm1168, %v1127
        %s1170 = scalar_lea.vmem [#allocation5], 96
        %1171 = vst.msk [vmem:[%s1170 + $0x2] sm:$0x3f] %vm826, %v1130
        %s1172 = scalar_lea.vmem [#allocation5], 112
        %1173 = vst.msk [vmem:[%s1172 - $0x4] sm:$0xc0] %vm1159, %v1130
        %1174 = vst.msk [vmem:[%s1172 + $0x4] sm:$0xf] %vm1161, %v1133
        %v1175 = vld [vmem:[#allocation5] sm:$0xff]
        %v1176 = vld [vmem:[#allocation5 + $0x8] sm:$0x3]
        %v1177 = vld [vmem:[#allocation5 + $0x10] sm:$0xff]
        %v1178 = vld [vmem:[#allocation5 + $0x18] sm:$0x3]
        %v1179 = vld [vmem:[#allocation5 + $0x20] sm:$0xff]
        %v1180 = vld [vmem:[#allocation5 + $0x28] sm:$0x3]
        %v1181 = vld [vmem:[#allocation5 + $0x30] sm:$0xff]
        %v1182 = vld [vmem:[#allocation5 + $0x38] sm:$0x3]
        %v1183 = vld [vmem:[#allocation5 + $0x40] sm:$0xff]
        %v1184 = vld [vmem:[#allocation5 + $0x48] sm:$0x3]
        %v1185 = vld [vmem:[#allocation5 + $0x50] sm:$0xff]
        %v1186 = vld [vmem:[#allocation5 + $0x58] sm:$0x3]
        %v1187 = vld [vmem:[#allocation5 + $0x60] sm:$0xff]
        %v1188 = vld [vmem:[#allocation5 + $0x68] sm:$0x3]
        %v1189 = vld [vmem:[#allocation5 + $0x70] sm:$0xff]
        %v1190 = vld [vmem:[#allocation5 + $0x78] sm:$0x3]
        %v1191 = vld [vmem:[#allocation5 + $0x80] sm:$0xff]
        %v1192 = vld [vmem:[#allocation5 + $0x88] sm:$0x3]
        %v1193 = vld [vmem:[#allocation5 + $0x90] sm:$0xff]
        %v1194 = vld [vmem:[#allocation5 + $0x98] sm:$0x3]
        %v1195 = vld [vmem:[%s11] sm:$0xff]
        %v1196 = vld [vmem:[%s11 + $0x8] sm:$0x1]
        %v1197 = vperm.slane %v1195, 0
        %v1198 = vmul.f32 %v1175, %v1197
        %v1199 = vmul.f32 %v1177, %v1197
        %v1200 = vmul.f32 %v1179, %v1197
        %v1201 = vmul.f32 %v1181, %v1197
        %v1202 = vmul.f32 %v1183, %v1197
        %v1203 = vmul.f32 %v1185, %v1197
        %v1204 = vmul.f32 %v1187, %v1197
        %v1205 = vmul.f32 %v1189, %v1197
        %v1206 = vsel %vm843, %v1198, 0.0
        %1207 = vadd.xlane.f32.xlu0 %v1206
        %v1208 = vpop.xlane.xlu0 %1207
        %v1209 = vsel %vm843, %v1199, 0.0
        %1210 = vadd.xlane.f32.xlu0 %v1209
        %v1211 = vpop.xlane.xlu0 %1210
        %v1212 = vsel %vm843, %v1200, 0.0
        %1213 = vadd.xlane.f32.xlu0 %v1212
        %v1214 = vpop.xlane.xlu0 %1213
        %v1215 = vsel %vm843, %v1201, 0.0
        %1216 = vadd.xlane.f32.xlu0 %v1215
        %v1217 = vpop.xlane.xlu0 %1216
        %v1218 = vsel %vm843, %v1202, 0.0
        %1219 = vadd.xlane.f32.xlu0 %v1218
        %v1220 = vpop.xlane.xlu0 %1219
        %v1221 = vsel %vm843, %v1203, 0.0
        %1222 = vadd.xlane.f32.xlu0 %v1221
        %v1223 = vpop.xlane.xlu0 %1222
        %v1224 = vsel %vm843, %v1204, 0.0
        %1225 = vadd.xlane.f32.xlu0 %v1224
        %v1226 = vpop.xlane.xlu0 %1225
        %v1227 = vsel %vm843, %v1205, 0.0
        %1228 = vadd.xlane.f32.xlu0 %v1227
        %v1229 = vpop.xlane.xlu0 %1228
        %v1230 = vadd.f32 %v1208, 0.0
        %v1231 = vadd.f32 %v1211, 0.0
        %v1232 = vadd.f32 %v1214, 0.0
        %v1233 = vadd.f32 %v1217, 0.0
        %v1234 = vadd.f32 %v1220, 0.0
        %v1235 = vadd.f32 %v1223, 0.0
        %v1236 = vadd.f32 %v1226, 0.0
        %v1237 = vadd.f32 %v1229, 0.0
        %v1238 = vperm.slane %v1195, 1
        %v1239 = vmul.f32 %v1175, %v1238
        %v1240 = vmul.f32 %v1176, %v1238
        %v1241 = vmul.f32 %v1177, %v1238
        %v1242 = vmul.f32 %v1178, %v1238
        %v1243 = vmul.f32 %v1179, %v1238
        %v1244 = vmul.f32 %v1180, %v1238
        %v1245 = vmul.f32 %v1181, %v1238
        %v1246 = vmul.f32 %v1182, %v1238
        %v1247 = vmul.f32 %v1183, %v1238
        %v1248 = vmul.f32 %v1184, %v1238
        %v1249 = vmul.f32 %v1185, %v1238
        %v1250 = vmul.f32 %v1186, %v1238
        %v1251 = vmul.f32 %v1187, %v1238
        %v1252 = vmul.f32 %v1188, %v1238
        %v1253 = vmul.f32 %v1189, %v1238
        %v1254 = vmul.f32 %v1190, %v1238
        %vm1255 = vcmask 64513
        %v1256 = vsel %vm1255, %v1239, 0.0
        %1257 = vadd.xlane.f32.xlu0 %v1256
        %v1258 = vpop.xlane.xlu0 %1257
        %vm1259 = vcmask 57344
        %v1260 = vsel %vm1259, %v1240, 0.0
        %1261 = vadd.xlane.f32.xlu0 %v1260
        %v1262 = vpop.xlane.xlu0 %1261
        %v1263 = vsel %vm1255, %v1241, 0.0
        %1264 = vadd.xlane.f32.xlu0 %v1263
        %v1265 = vpop.xlane.xlu0 %1264
        %v1266 = vsel %vm1259, %v1242, 0.0
        %1267 = vadd.xlane.f32.xlu0 %v1266
        %v1268 = vpop.xlane.xlu0 %1267
        %v1269 = vsel %vm1255, %v1243, 0.0
        %1270 = vadd.xlane.f32.xlu0 %v1269
        %v1271 = vpop.xlane.xlu0 %1270
        %v1272 = vsel %vm1259, %v1244, 0.0
        %1273 = vadd.xlane.f32.xlu0 %v1272
        %v1274 = vpop.xlane.xlu0 %1273
        %v1275 = vsel %vm1255, %v1245, 0.0
        %1276 = vadd.xlane.f32.xlu0 %v1275
        %v1277 = vpop.xlane.xlu0 %1276
        %v1278 = vsel %vm1259, %v1246, 0.0
        %1279 = vadd.xlane.f32.xlu0 %v1278
        %v1280 = vpop.xlane.xlu0 %1279
        %v1281 = vsel %vm1255, %v1247, 0.0
        %1282 = vadd.xlane.f32.xlu0 %v1281
        %v1283 = vpop.xlane.xlu0 %1282
        %v1284 = vsel %vm1259, %v1248, 0.0
        %1285 = vadd.xlane.f32.xlu0 %v1284
        %v1286 = vpop.xlane.xlu0 %1285
        %v1287 = vsel %vm1255, %v1249, 0.0
        %1288 = vadd.xlane.f32.xlu0 %v1287
        %v1289 = vpop.xlane.xlu0 %1288
        %v1290 = vsel %vm1259, %v1250, 0.0
        %1291 = vadd.xlane.f32.xlu0 %v1290
        %v1292 = vpop.xlane.xlu0 %1291
        %v1293 = vsel %vm1255, %v1251, 0.0
        %1294 = vadd.xlane.f32.xlu0 %v1293
        %v1295 = vpop.xlane.xlu0 %1294
        %v1296 = vsel %vm1259, %v1252, 0.0
        %1297 = vadd.xlane.f32.xlu0 %v1296
        %v1298 = vpop.xlane.xlu0 %1297
        %v1299 = vsel %vm1255, %v1253, 0.0
        %1300 = vadd.xlane.f32.xlu0 %v1299
        %v1301 = vpop.xlane.xlu0 %1300
        %v1302 = vsel %vm1259, %v1254, 0.0
        %1303 = vadd.xlane.f32.xlu0 %v1302
        %v1304 = vpop.xlane.xlu0 %1303
        %vm1321 = vcmask 1046528
        %v1322 = vrot.slane %v1258, 1
        %v1323 = vrot.slane %v1262, 1
        %v1324 = vsel %vm1321, %v1322, %v1323
        %v1325 = vrot.slane %v1265, 1
        %v1326 = vrot.slane %v1268, 1
        %v1327 = vsel %vm1321, %v1325, %v1326
        %v1328 = vrot.slane %v1271, 1
        %v1329 = vrot.slane %v1274, 1
        %v1330 = vsel %vm1321, %v1328, %v1329
        %v1331 = vrot.slane %v1277, 1
        %v1332 = vrot.slane %v1280, 1
        %v1333 = vsel %vm1321, %v1331, %v1332
        %v1334 = vrot.slane %v1283, 1
        %v1335 = vrot.slane %v1286, 1
        %v1336 = vsel %vm1321, %v1334, %v1335
        %v1337 = vrot.slane %v1289, 1
        %v1338 = vrot.slane %v1292, 1
        %v1339 = vsel %vm1321, %v1337, %v1338
        %v1340 = vrot.slane %v1295, 1
        %v1341 = vrot.slane %v1298, 1
        %v1342 = vsel %vm1321, %v1340, %v1341
        %v1343 = vrot.slane %v1301, 1
        %v1344 = vrot.slane %v1304, 1
        %v1345 = vsel %vm1321, %v1343, %v1344
        %v1354 = vadd.f32 %v1230, %v1324
        %v1355 = vadd.f32 %v1231, %v1327
        %v1356 = vadd.f32 %v1232, %v1330
        %v1357 = vadd.f32 %v1233, %v1333
        %v1358 = vadd.f32 %v1234, %v1336
        %v1359 = vadd.f32 %v1235, %v1339
        %v1360 = vadd.f32 %v1236, %v1342
        %v1361 = vadd.f32 %v1237, %v1345
        %v1362 = vperm.slane %v1195, 2
        %v1363 = vmul.f32 %v1175, %v1362
        %v1364 = vmul.f32 %v1176, %v1362
        %v1365 = vmul.f32 %v1177, %v1362
        %v1366 = vmul.f32 %v1178, %v1362
        %v1367 = vmul.f32 %v1179, %v1362
        %v1368 = vmul.f32 %v1180, %v1362
        %v1369 = vmul.f32 %v1181, %v1362
        %v1370 = vmul.f32 %v1182, %v1362
        %v1371 = vmul.f32 %v1183, %v1362
        %v1372 = vmul.f32 %v1184, %v1362
        %v1373 = vmul.f32 %v1185, %v1362
        %v1374 = vmul.f32 %v1186, %v1362
        %v1375 = vmul.f32 %v1187, %v1362
        %v1376 = vmul.f32 %v1188, %v1362
        %v1377 = vmul.f32 %v1189, %v1362
        %v1378 = vmul.f32 %v1190, %v1362
        %v1379 = vsel %vm1168, %v1363, 0.0
        %1380 = vadd.xlane.f32.xlu0 %v1379
        %v1381 = vpop.xlane.xlu0 %1380
        %v1382 = vsel %vm1136, %v1364, 0.0
        %1383 = vadd.xlane.f32.xlu0 %v1382
        %v1384 = vpop.xlane.xlu0 %1383
        %v1385 = vsel %vm1168, %v1365, 0.0
        %1386 = vadd.xlane.f32.xlu0 %v1385
        %v1387 = vpop.xlane.xlu0 %1386
        %v1388 = vsel %vm1136, %v1366, 0.0
        %1389 = vadd.xlane.f32.xlu0 %v1388
        %v1390 = vpop.xlane.xlu0 %1389
        %v1391 = vsel %vm1168, %v1367, 0.0
        %1392 = vadd.xlane.f32.xlu0 %v1391
        %v1393 = vpop.xlane.xlu0 %1392
        %v1394 = vsel %vm1136, %v1368, 0.0
        %1395 = vadd.xlane.f32.xlu0 %v1394
        %v1396 = vpop.xlane.xlu0 %1395
        %v1397 = vsel %vm1168, %v1369, 0.0
        %1398 = vadd.xlane.f32.xlu0 %v1397
        %v1399 = vpop.xlane.xlu0 %1398
        %v1400 = vsel %vm1136, %v1370, 0.0
        %1401 = vadd.xlane.f32.xlu0 %v1400
        %v1402 = vpop.xlane.xlu0 %1401
        %v1403 = vsel %vm1168, %v1371, 0.0
        %1404 = vadd.xlane.f32.xlu0 %v1403
        %v1405 = vpop.xlane.xlu0 %1404
        %v1406 = vsel %vm1136, %v1372, 0.0
        %1407 = vadd.xlane.f32.xlu0 %v1406
        %v1408 = vpop.xlane.xlu0 %1407
        %v1409 = vsel %vm1168, %v1373, 0.0
        %1410 = vadd.xlane.f32.xlu0 %v1409
        %v1411 = vpop.xlane.xlu0 %1410
        %v1412 = vsel %vm1136, %v1374, 0.0
        %1413 = vadd.xlane.f32.xlu0 %v1412
        %v1414 = vpop.xlane.xlu0 %1413
        %v1415 = vsel %vm1168, %v1375, 0.0
        %1416 = vadd.xlane.f32.xlu0 %v1415
        %v1417 = vpop.xlane.xlu0 %1416
        %v1418 = vsel %vm1136, %v1376, 0.0
        %1419 = vadd.xlane.f32.xlu0 %v1418
        %v1420 = vpop.xlane.xlu0 %1419
        %v1421 = vsel %vm1168, %v1377, 0.0
        %1422 = vadd.xlane.f32.xlu0 %v1421
        %v1423 = vpop.xlane.xlu0 %1422
        %v1424 = vsel %vm1136, %v1378, 0.0
        %1425 = vadd.xlane.f32.xlu0 %v1424
        %v1426 = vpop.xlane.xlu0 %1425
        %vm1443 = vcmask 1045504
        %v1444 = vrot.slane %v1381, 2
        %v1445 = vrot.slane %v1384, 2
        %v1446 = vsel %vm1443, %v1444, %v1445
        %v1447 = vrot.slane %v1387, 2
        %v1448 = vrot.slane %v1390, 2
        %v1449 = vsel %vm1443, %v1447, %v1448
        %v1450 = vrot.slane %v1393, 2
        %v1451 = vrot.slane %v1396, 2
        %v1452 = vsel %vm1443, %v1450, %v1451
        %v1453 = vrot.slane %v1399, 2
        %v1454 = vrot.slane %v1402, 2
        %v1455 = vsel %vm1443, %v1453, %v1454
        %v1456 = vrot.slane %v1405, 2
        %v1457 = vrot.slane %v1408, 2
        %v1458 = vsel %vm1443, %v1456, %v1457
        %v1459 = vrot.slane %v1411, 2
        %v1460 = vrot.slane %v1414, 2
        %v1461 = vsel %vm1443, %v1459, %v1460
        %v1462 = vrot.slane %v1417, 2
        %v1463 = vrot.slane %v1420, 2
        %v1464 = vsel %vm1443, %v1462, %v1463
        %v1465 = vrot.slane %v1423, 2
        %v1466 = vrot.slane %v1426, 2
        %v1467 = vsel %vm1443, %v1465, %v1466
        %v1476 = vadd.f32 %v1354, %v1446
        %v1477 = vadd.f32 %v1355, %v1449
        %v1478 = vadd.f32 %v1356, %v1452
        %v1479 = vadd.f32 %v1357, %v1455
        %v1480 = vadd.f32 %v1358, %v1458
        %v1481 = vadd.f32 %v1359, %v1461
        %v1482 = vadd.f32 %v1360, %v1464
        %v1483 = vadd.f32 %v1361, %v1467
        %v1484 = vperm.slane %v1195, 3
        %v1485 = vmul.f32 %v1177, %v1484
        %v1486 = vmul.f32 %v1179, %v1484
        %v1487 = vmul.f32 %v1181, %v1484
        %v1488 = vmul.f32 %v1183, %v1484
        %v1489 = vmul.f32 %v1185, %v1484
        %v1490 = vmul.f32 %v1187, %v1484
        %v1491 = vmul.f32 %v1189, %v1484
        %v1492 = vmul.f32 %v1191, %v1484
        %v1493 = vsel %vm843, %v1485, 0.0
        %1494 = vadd.xlane.f32.xlu0 %v1493
        %v1495 = vpop.xlane.xlu0 %1494
        %v1496 = vsel %vm843, %v1486, 0.0
        %1497 = vadd.xlane.f32.xlu0 %v1496
        %v1498 = vpop.xlane.xlu0 %1497
        %v1499 = vsel %vm843, %v1487, 0.0
        %1500 = vadd.xlane.f32.xlu0 %v1499
        %v1501 = vpop.xlane.xlu0 %1500
        %v1502 = vsel %vm843, %v1488, 0.0
        %1503 = vadd.xlane.f32.xlu0 %v1502
        %v1504 = vpop.xlane.xlu0 %1503
        %v1505 = vsel %vm843, %v1489, 0.0
        %1506 = vadd.xlane.f32.xlu0 %v1505
        %v1507 = vpop.xlane.xlu0 %1506
        %v1508 = vsel %vm843, %v1490, 0.0
        %1509 = vadd.xlane.f32.xlu0 %v1508
        %v1510 = vpop.xlane.xlu0 %1509
        %v1511 = vsel %vm843, %v1491, 0.0
        %1512 = vadd.xlane.f32.xlu0 %v1511
        %v1513 = vpop.xlane.xlu0 %1512
        %v1514 = vsel %vm843, %v1492, 0.0
        %1515 = vadd.xlane.f32.xlu0 %v1514
        %v1516 = vpop.xlane.xlu0 %1515
        %v1517 = vadd.f32 %v1476, %v1495
        %v1518 = vadd.f32 %v1477, %v1498
        %v1519 = vadd.f32 %v1478, %v1501
        %v1520 = vadd.f32 %v1479, %v1504
        %v1521 = vadd.f32 %v1480, %v1507
        %v1522 = vadd.f32 %v1481, %v1510
        %v1523 = vadd.f32 %v1482, %v1513
        %v1524 = vadd.f32 %v1483, %v1516
        %v1525 = vperm.slane %v1195, 4
        %v1526 = vmul.f32 %v1177, %v1525
        %v1527 = vmul.f32 %v1178, %v1525
        %v1528 = vmul.f32 %v1179, %v1525
        %v1529 = vmul.f32 %v1180, %v1525
        %v1530 = vmul.f32 %v1181, %v1525
        %v1531 = vmul.f32 %v1182, %v1525
        %v1532 = vmul.f32 %v1183, %v1525
        %v1533 = vmul.f32 %v1184, %v1525
        %v1534 = vmul.f32 %v1185, %v1525
        %v1535 = vmul.f32 %v1186, %v1525
        %v1536 = vmul.f32 %v1187, %v1525
        %v1537 = vmul.f32 %v1188, %v1525
        %v1538 = vmul.f32 %v1189, %v1525
        %v1539 = vmul.f32 %v1190, %v1525
        %v1540 = vmul.f32 %v1191, %v1525
        %v1541 = vmul.f32 %v1192, %v1525
        %v1542 = vsel %vm1255, %v1526, 0.0
        %1543 = vadd.xlane.f32.xlu0 %v1542
        %v1544 = vpop.xlane.xlu0 %1543
        %v1545 = vsel %vm1259, %v1527, 0.0
        %1546 = vadd.xlane.f32.xlu0 %v1545
        %v1547 = vpop.xlane.xlu0 %1546
        %v1548 = vsel %vm1255, %v1528, 0.0
        %1549 = vadd.xlane.f32.xlu0 %v1548
        %v1550 = vpop.xlane.xlu0 %1549
        %v1551 = vsel %vm1259, %v1529, 0.0
        %1552 = vadd.xlane.f32.xlu0 %v1551
        %v1553 = vpop.xlane.xlu0 %1552
        %v1554 = vsel %vm1255, %v1530, 0.0
        %1555 = vadd.xlane.f32.xlu0 %v1554
        %v1556 = vpop.xlane.xlu0 %1555
        %v1557 = vsel %vm1259, %v1531, 0.0
        %1558 = vadd.xlane.f32.xlu0 %v1557
        %v1559 = vpop.xlane.xlu0 %1558
        %v1560 = vsel %vm1255, %v1532, 0.0
        %1561 = vadd.xlane.f32.xlu0 %v1560
        %v1562 = vpop.xlane.xlu0 %1561
        %v1563 = vsel %vm1259, %v1533, 0.0
        %1564 = vadd.xlane.f32.xlu0 %v1563
        %v1565 = vpop.xlane.xlu0 %1564
        %v1566 = vsel %vm1255, %v1534, 0.0
        %1567 = vadd.xlane.f32.xlu0 %v1566
        %v1568 = vpop.xlane.xlu0 %1567
        %v1569 = vsel %vm1259, %v1535, 0.0
        %1570 = vadd.xlane.f32.xlu0 %v1569
        %v1571 = vpop.xlane.xlu0 %1570
        %v1572 = vsel %vm1255, %v1536, 0.0
        %1573 = vadd.xlane.f32.xlu0 %v1572
        %v1574 = vpop.xlane.xlu0 %1573
        %v1575 = vsel %vm1259, %v1537, 0.0
        %1576 = vadd.xlane.f32.xlu0 %v1575
        %v1577 = vpop.xlane.xlu0 %1576
        %v1578 = vsel %vm1255, %v1538, 0.0
        %1579 = vadd.xlane.f32.xlu0 %v1578
        %v1580 = vpop.xlane.xlu0 %1579
        %v1581 = vsel %vm1259, %v1539, 0.0
        %1582 = vadd.xlane.f32.xlu0 %v1581
        %v1583 = vpop.xlane.xlu0 %1582
        %v1584 = vsel %vm1255, %v1540, 0.0
        %1585 = vadd.xlane.f32.xlu0 %v1584
        %v1586 = vpop.xlane.xlu0 %1585
        %v1587 = vsel %vm1259, %v1541, 0.0
        %1588 = vadd.xlane.f32.xlu0 %v1587
        %v1589 = vpop.xlane.xlu0 %1588
        %v1606 = vrot.slane %v1544, 1
        %v1607 = vrot.slane %v1547, 1
        %v1608 = vsel %vm1321, %v1606, %v1607
        %v1609 = vrot.slane %v1550, 1
        %v1610 = vrot.slane %v1553, 1
        %v1611 = vsel %vm1321, %v1609, %v1610
        %v1612 = vrot.slane %v1556, 1
        %v1613 = vrot.slane %v1559, 1
        %v1614 = vsel %vm1321, %v1612, %v1613
        %v1615 = vrot.slane %v1562, 1
        %v1616 = vrot.slane %v1565, 1
        %v1617 = vsel %vm1321, %v1615, %v1616
        %v1618 = vrot.slane %v1568, 1
        %v1619 = vrot.slane %v1571, 1
        %v1620 = vsel %vm1321, %v1618, %v1619
        %v1621 = vrot.slane %v1574, 1
        %v1622 = vrot.slane %v1577, 1
        %v1623 = vsel %vm1321, %v1621, %v1622
        %v1624 = vrot.slane %v1580, 1
        %v1625 = vrot.slane %v1583, 1
        %v1626 = vsel %vm1321, %v1624, %v1625
        %v1627 = vrot.slane %v1586, 1
        %v1628 = vrot.slane %v1589, 1
        %v1629 = vsel %vm1321, %v1627, %v1628
        %v1638 = vadd.f32 %v1517, %v1608
        %v1639 = vadd.f32 %v1518, %v1611
        %v1640 = vadd.f32 %v1519, %v1614
        %v1641 = vadd.f32 %v1520, %v1617
        %v1642 = vadd.f32 %v1521, %v1620
        %v1643 = vadd.f32 %v1522, %v1623
        %v1644 = vadd.f32 %v1523, %v1626
        %v1645 = vadd.f32 %v1524, %v1629
        %v1646 = vperm.slane %v1195, 5
        %v1647 = vmul.f32 %v1177, %v1646
        %v1648 = vmul.f32 %v1178, %v1646
        %v1649 = vmul.f32 %v1179, %v1646
        %v1650 = vmul.f32 %v1180, %v1646
        %v1651 = vmul.f32 %v1181, %v1646
        %v1652 = vmul.f32 %v1182, %v1646
        %v1653 = vmul.f32 %v1183, %v1646
        %v1654 = vmul.f32 %v1184, %v1646
        %v1655 = vmul.f32 %v1185, %v1646
        %v1656 = vmul.f32 %v1186, %v1646
        %v1657 = vmul.f32 %v1187, %v1646
        %v1658 = vmul.f32 %v1188, %v1646
        %v1659 = vmul.f32 %v1189, %v1646
        %v1660 = vmul.f32 %v1190, %v1646
        %v1661 = vmul.f32 %v1191, %v1646
        %v1662 = vmul.f32 %v1192, %v1646
        %v1663 = vsel %vm1168, %v1647, 0.0
        %1664 = vadd.xlane.f32.xlu0 %v1663
        %v1665 = vpop.xlane.xlu0 %1664
        %v1666 = vsel %vm1136, %v1648, 0.0
        %1667 = vadd.xlane.f32.xlu0 %v1666
        %v1668 = vpop.xlane.xlu0 %1667
        %v1669 = vsel %vm1168, %v1649, 0.0
        %1670 = vadd.xlane.f32.xlu0 %v1669
        %v1671 = vpop.xlane.xlu0 %1670
        %v1672 = vsel %vm1136, %v1650, 0.0
        %1673 = vadd.xlane.f32.xlu0 %v1672
        %v1674 = vpop.xlane.xlu0 %1673
        %v1675 = vsel %vm1168, %v1651, 0.0
        %1676 = vadd.xlane.f32.xlu0 %v1675
        %v1677 = vpop.xlane.xlu0 %1676
        %v1678 = vsel %vm1136, %v1652, 0.0
        %1679 = vadd.xlane.f32.xlu0 %v1678
        %v1680 = vpop.xlane.xlu0 %1679
        %v1681 = vsel %vm1168, %v1653, 0.0
        %1682 = vadd.xlane.f32.xlu0 %v1681
        %v1683 = vpop.xlane.xlu0 %1682
        %v1684 = vsel %vm1136, %v1654, 0.0
        %1685 = vadd.xlane.f32.xlu0 %v1684
        %v1686 = vpop.xlane.xlu0 %1685
        %v1687 = vsel %vm1168, %v1655, 0.0
        %1688 = vadd.xlane.f32.xlu0 %v1687
        %v1689 = vpop.xlane.xlu0 %1688
        %v1690 = vsel %vm1136, %v1656, 0.0
        %1691 = vadd.xlane.f32.xlu0 %v1690
        %v1692 = vpop.xlane.xlu0 %1691
        %v1693 = vsel %vm1168, %v1657, 0.0
        %1694 = vadd.xlane.f32.xlu0 %v1693
        %v1695 = vpop.xlane.xlu0 %1694
        %v1696 = vsel %vm1136, %v1658, 0.0
        %1697 = vadd.xlane.f32.xlu0 %v1696
        %v1698 = vpop.xlane.xlu0 %1697
        %v1699 = vsel %vm1168, %v1659, 0.0
        %1700 = vadd.xlane.f32.xlu0 %v1699
        %v1701 = vpop.xlane.xlu0 %1700
        %v1702 = vsel %vm1136, %v1660, 0.0
        %1703 = vadd.xlane.f32.xlu0 %v1702
        %v1704 = vpop.xlane.xlu0 %1703
        %v1705 = vsel %vm1168, %v1661, 0.0
        %1706 = vadd.xlane.f32.xlu0 %v1705
        %v1707 = vpop.xlane.xlu0 %1706
        %v1708 = vsel %vm1136, %v1662, 0.0
        %1709 = vadd.xlane.f32.xlu0 %v1708
        %v1710 = vpop.xlane.xlu0 %1709
        %v1727 = vrot.slane %v1665, 2
        %v1728 = vrot.slane %v1668, 2
        %v1729 = vsel %vm1443, %v1727, %v1728
        %v1730 = vrot.slane %v1671, 2
        %v1731 = vrot.slane %v1674, 2
        %v1732 = vsel %vm1443, %v1730, %v1731
        %v1733 = vrot.slane %v1677, 2
        %v1734 = vrot.slane %v1680, 2
        %v1735 = vsel %vm1443, %v1733, %v1734
        %v1736 = vrot.slane %v1683, 2
        %v1737 = vrot.slane %v1686, 2
        %v1738 = vsel %vm1443, %v1736, %v1737
        %v1739 = vrot.slane %v1689, 2
        %v1740 = vrot.slane %v1692, 2
        %v1741 = vsel %vm1443, %v1739, %v1740
        %v1742 = vrot.slane %v1695, 2
        %v1743 = vrot.slane %v1698, 2
        %v1744 = vsel %vm1443, %v1742, %v1743
        %v1745 = vrot.slane %v1701, 2
        %v1746 = vrot.slane %v1704, 2
        %v1747 = vsel %vm1443, %v1745, %v1746
        %v1748 = vrot.slane %v1707, 2
        %v1749 = vrot.slane %v1710, 2
        %v1750 = vsel %vm1443, %v1748, %v1749
        %v1759 = vadd.f32 %v1638, %v1729
        %v1760 = vadd.f32 %v1639, %v1732
        %v1761 = vadd.f32 %v1640, %v1735
        %v1762 = vadd.f32 %v1641, %v1738
        %v1763 = vadd.f32 %v1642, %v1741
        %v1764 = vadd.f32 %v1643, %v1744
        %v1765 = vadd.f32 %v1644, %v1747
        %v1766 = vadd.f32 %v1645, %v1750
        %v1767 = vperm.slane %v1195, 6
        %v1768 = vmul.f32 %v1179, %v1767
        %v1769 = vmul.f32 %v1181, %v1767
        %v1770 = vmul.f32 %v1183, %v1767
        %v1771 = vmul.f32 %v1185, %v1767
        %v1772 = vmul.f32 %v1187, %v1767
        %v1773 = vmul.f32 %v1189, %v1767
        %v1774 = vmul.f32 %v1191, %v1767
        %v1775 = vmul.f32 %v1193, %v1767
        %v1776 = vsel %vm843, %v1768, 0.0
        %1777 = vadd.xlane.f32.xlu0 %v1776
        %v1778 = vpop.xlane.xlu0 %1777
        %v1779 = vsel %vm843, %v1769, 0.0
        %1780 = vadd.xlane.f32.xlu0 %v1779
        %v1781 = vpop.xlane.xlu0 %1780
        %v1782 = vsel %vm843, %v1770, 0.0
        %1783 = vadd.xlane.f32.xlu0 %v1782
        %v1784 = vpop.xlane.xlu0 %1783
        %v1785 = vsel %vm843, %v1771, 0.0
        %1786 = vadd.xlane.f32.xlu0 %v1785
        %v1787 = vpop.xlane.xlu0 %1786
        %v1788 = vsel %vm843, %v1772, 0.0
        %1789 = vadd.xlane.f32.xlu0 %v1788
        %v1790 = vpop.xlane.xlu0 %1789
        %v1791 = vsel %vm843, %v1773, 0.0
        %1792 = vadd.xlane.f32.xlu0 %v1791
        %v1793 = vpop.xlane.xlu0 %1792
        %v1794 = vsel %vm843, %v1774, 0.0
        %1795 = vadd.xlane.f32.xlu0 %v1794
        %v1796 = vpop.xlane.xlu0 %1795
        %v1797 = vsel %vm843, %v1775, 0.0
        %1798 = vadd.xlane.f32.xlu0 %v1797
        %v1799 = vpop.xlane.xlu0 %1798
        %v1800 = vadd.f32 %v1759, %v1778
        %v1801 = vadd.f32 %v1760, %v1781
        %v1802 = vadd.f32 %v1761, %v1784
        %v1803 = vadd.f32 %v1762, %v1787
        %v1804 = vadd.f32 %v1763, %v1790
        %v1805 = vadd.f32 %v1764, %v1793
        %v1806 = vadd.f32 %v1765, %v1796
        %v1807 = vadd.f32 %v1766, %v1799
        %v1808 = vperm.slane %v1195, 7
        %v1809 = vmul.f32 %v1179, %v1808
        %v1810 = vmul.f32 %v1180, %v1808
        %v1811 = vmul.f32 %v1181, %v1808
        %v1812 = vmul.f32 %v1182, %v1808
        %v1813 = vmul.f32 %v1183, %v1808
        %v1814 = vmul.f32 %v1184, %v1808
        %v1815 = vmul.f32 %v1185, %v1808
        %v1816 = vmul.f32 %v1186, %v1808
        %v1817 = vmul.f32 %v1187, %v1808
        %v1818 = vmul.f32 %v1188, %v1808
        %v1819 = vmul.f32 %v1189, %v1808
        %v1820 = vmul.f32 %v1190, %v1808
        %v1821 = vmul.f32 %v1191, %v1808
        %v1822 = vmul.f32 %v1192, %v1808
        %v1823 = vmul.f32 %v1193, %v1808
        %v1824 = vmul.f32 %v1194, %v1808
        %v1825 = vsel %vm1255, %v1809, 0.0
        %1826 = vadd.xlane.f32.xlu0 %v1825
        %v1827 = vpop.xlane.xlu0 %1826
        %v1828 = vsel %vm1259, %v1810, 0.0
        %1829 = vadd.xlane.f32.xlu0 %v1828
        %v1830 = vpop.xlane.xlu0 %1829
        %v1831 = vsel %vm1255, %v1811, 0.0
        %1832 = vadd.xlane.f32.xlu0 %v1831
        %v1833 = vpop.xlane.xlu0 %1832
        %v1834 = vsel %vm1259, %v1812, 0.0
        %1835 = vadd.xlane.f32.xlu0 %v1834
        %v1836 = vpop.xlane.xlu0 %1835
        %v1837 = vsel %vm1255, %v1813, 0.0
        %1838 = vadd.xlane.f32.xlu0 %v1837
        %v1839 = vpop.xlane.xlu0 %1838
        %v1840 = vsel %vm1259, %v1814, 0.0
        %1841 = vadd.xlane.f32.xlu0 %v1840
        %v1842 = vpop.xlane.xlu0 %1841
        %v1843 = vsel %vm1255, %v1815, 0.0
        %1844 = vadd.xlane.f32.xlu0 %v1843
        %v1845 = vpop.xlane.xlu0 %1844
        %v1846 = vsel %vm1259, %v1816, 0.0
        %1847 = vadd.xlane.f32.xlu0 %v1846
        %v1848 = vpop.xlane.xlu0 %1847
        %v1849 = vsel %vm1255, %v1817, 0.0
        %1850 = vadd.xlane.f32.xlu0 %v1849
        %v1851 = vpop.xlane.xlu0 %1850
        %v1852 = vsel %vm1259, %v1818, 0.0
        %1853 = vadd.xlane.f32.xlu0 %v1852
        %v1854 = vpop.xlane.xlu0 %1853
        %v1855 = vsel %vm1255, %v1819, 0.0
        %1856 = vadd.xlane.f32.xlu0 %v1855
        %v1857 = vpop.xlane.xlu0 %1856
        %v1858 = vsel %vm1259, %v1820, 0.0
        %1859 = vadd.xlane.f32.xlu0 %v1858
        %v1860 = vpop.xlane.xlu0 %1859
        %v1861 = vsel %vm1255, %v1821, 0.0
        %1862 = vadd.xlane.f32.xlu0 %v1861
        %v1863 = vpop.xlane.xlu0 %1862
        %v1864 = vsel %vm1259, %v1822, 0.0
        %1865 = vadd.xlane.f32.xlu0 %v1864
        %v1866 = vpop.xlane.xlu0 %1865
        %v1867 = vsel %vm1255, %v1823, 0.0
        %1868 = vadd.xlane.f32.xlu0 %v1867
        %v1869 = vpop.xlane.xlu0 %1868
        %v1870 = vsel %vm1259, %v1824, 0.0
        %1871 = vadd.xlane.f32.xlu0 %v1870
        %v1872 = vpop.xlane.xlu0 %1871
        %v1889 = vrot.slane %v1827, 1
        %v1890 = vrot.slane %v1830, 1
        %v1891 = vsel %vm1321, %v1889, %v1890
        %v1892 = vrot.slane %v1833, 1
        %v1893 = vrot.slane %v1836, 1
        %v1894 = vsel %vm1321, %v1892, %v1893
        %v1895 = vrot.slane %v1839, 1
        %v1896 = vrot.slane %v1842, 1
        %v1897 = vsel %vm1321, %v1895, %v1896
        %v1898 = vrot.slane %v1845, 1
        %v1899 = vrot.slane %v1848, 1
        %v1900 = vsel %vm1321, %v1898, %v1899
        %v1901 = vrot.slane %v1851, 1
        %v1902 = vrot.slane %v1854, 1
        %v1903 = vsel %vm1321, %v1901, %v1902
        %v1904 = vrot.slane %v1857, 1
        %v1905 = vrot.slane %v1860, 1
        %v1906 = vsel %vm1321, %v1904, %v1905
        %v1907 = vrot.slane %v1863, 1
        %v1908 = vrot.slane %v1866, 1
        %v1909 = vsel %vm1321, %v1907, %v1908
        %v1910 = vrot.slane %v1869, 1
        %v1911 = vrot.slane %v1872, 1
        %v1912 = vsel %vm1321, %v1910, %v1911
        %v1921 = vadd.f32 %v1800, %v1891
        %v1922 = vadd.f32 %v1801, %v1894
        %v1923 = vadd.f32 %v1802, %v1897
        %v1924 = vadd.f32 %v1803, %v1900
        %v1925 = vadd.f32 %v1804, %v1903
        %v1926 = vadd.f32 %v1805, %v1906
        %v1927 = vadd.f32 %v1806, %v1909
        %v1928 = vadd.f32 %v1807, %v1912
        %v1929 = vperm.slane %v1196, 0
        %v1930 = vmul.f32 %v1179, %v1929
        %v1931 = vmul.f32 %v1180, %v1929
        %v1932 = vmul.f32 %v1181, %v1929
        %v1933 = vmul.f32 %v1182, %v1929
        %v1934 = vmul.f32 %v1183, %v1929
        %v1935 = vmul.f32 %v1184, %v1929
        %v1936 = vmul.f32 %v1185, %v1929
        %v1937 = vmul.f32 %v1186, %v1929
        %v1938 = vmul.f32 %v1187, %v1929
        %v1939 = vmul.f32 %v1188, %v1929
        %v1940 = vmul.f32 %v1189, %v1929
        %v1941 = vmul.f32 %v1190, %v1929
        %v1942 = vmul.f32 %v1191, %v1929
        %v1943 = vmul.f32 %v1192, %v1929
        %v1944 = vmul.f32 %v1193, %v1929
        %v1945 = vmul.f32 %v1194, %v1929
        %v1946 = vsel %vm1168, %v1930, 0.0
        %1947 = vadd.xlane.f32.xlu0 %v1946
        %v1948 = vpop.xlane.xlu0 %1947
        %v1949 = vsel %vm1136, %v1931, 0.0
        %1950 = vadd.xlane.f32.xlu0 %v1949
        %v1951 = vpop.xlane.xlu0 %1950
        %v1952 = vsel %vm1168, %v1932, 0.0
        %1953 = vadd.xlane.f32.xlu0 %v1952
        %v1954 = vpop.xlane.xlu0 %1953
        %v1955 = vsel %vm1136, %v1933, 0.0
        %1956 = vadd.xlane.f32.xlu0 %v1955
        %v1957 = vpop.xlane.xlu0 %1956
        %v1958 = vsel %vm1168, %v1934, 0.0
        %1959 = vadd.xlane.f32.xlu0 %v1958
        %v1960 = vpop.xlane.xlu0 %1959
        %v1961 = vsel %vm1136, %v1935, 0.0
        %1962 = vadd.xlane.f32.xlu0 %v1961
        %v1963 = vpop.xlane.xlu0 %1962
        %v1964 = vsel %vm1168, %v1936, 0.0
        %1965 = vadd.xlane.f32.xlu0 %v1964
        %v1966 = vpop.xlane.xlu0 %1965
        %v1967 = vsel %vm1136, %v1937, 0.0
        %1968 = vadd.xlane.f32.xlu0 %v1967
        %v1969 = vpop.xlane.xlu0 %1968
        %v1970 = vsel %vm1168, %v1938, 0.0
        %1971 = vadd.xlane.f32.xlu0 %v1970
        %v1972 = vpop.xlane.xlu0 %1971
        %v1973 = vsel %vm1136, %v1939, 0.0
        %1974 = vadd.xlane.f32.xlu0 %v1973
        %v1975 = vpop.xlane.xlu0 %1974
        %v1976 = vsel %vm1168, %v1940, 0.0
        %1977 = vadd.xlane.f32.xlu0 %v1976
        %v1978 = vpop.xlane.xlu0 %1977
        %v1979 = vsel %vm1136, %v1941, 0.0
        %1980 = vadd.xlane.f32.xlu0 %v1979
        %v1981 = vpop.xlane.xlu0 %1980
        %v1982 = vsel %vm1168, %v1942, 0.0
        %1983 = vadd.xlane.f32.xlu0 %v1982
        %v1984 = vpop.xlane.xlu0 %1983
        %v1985 = vsel %vm1136, %v1943, 0.0
        %1986 = vadd.xlane.f32.xlu0 %v1985
        %v1987 = vpop.xlane.xlu0 %1986
        %v1988 = vsel %vm1168, %v1944, 0.0
        %1989 = vadd.xlane.f32.xlu0 %v1988
        %v1990 = vpop.xlane.xlu0 %1989
        %v1991 = vsel %vm1136, %v1945, 0.0
        %1992 = vadd.xlane.f32.xlu0 %v1991
        %v1993 = vpop.xlane.xlu0 %1992
        %v2010 = vrot.slane %v1948, 2
        %v2011 = vrot.slane %v1951, 2
        %v2012 = vsel %vm1443, %v2010, %v2011
        %v2013 = vrot.slane %v1954, 2
        %v2014 = vrot.slane %v1957, 2
        %v2015 = vsel %vm1443, %v2013, %v2014
        %v2016 = vrot.slane %v1960, 2
        %v2017 = vrot.slane %v1963, 2
        %v2018 = vsel %vm1443, %v2016, %v2017
        %v2019 = vrot.slane %v1966, 2
        %v2020 = vrot.slane %v1969, 2
        %v2021 = vsel %vm1443, %v2019, %v2020
        %v2022 = vrot.slane %v1972, 2
        %v2023 = vrot.slane %v1975, 2
        %v2024 = vsel %vm1443, %v2022, %v2023
        %v2025 = vrot.slane %v1978, 2
        %v2026 = vrot.slane %v1981, 2
        %v2027 = vsel %vm1443, %v2025, %v2026
        %v2028 = vrot.slane %v1984, 2
        %v2029 = vrot.slane %v1987, 2
        %v2030 = vsel %vm1443, %v2028, %v2029
        %v2031 = vrot.slane %v1990, 2
        %v2032 = vrot.slane %v1993, 2
        %v2033 = vsel %vm1443, %v2031, %v2032
        %v2042 = vadd.f32 %v1921, %v2012
        %v2043 = vadd.f32 %v1922, %v2015
        %v2044 = vadd.f32 %v1923, %v2018
        %v2045 = vadd.f32 %v1924, %v2021
        %v2046 = vadd.f32 %v1925, %v2024
        %v2047 = vadd.f32 %v1926, %v2027
        %v2048 = vadd.f32 %v1927, %v2030
        %v2049 = vadd.f32 %v1928, %v2033
        %v2050 = vld [vmem:[#allocation6] sm:$0x1]
        %v2052 = vperm.slane %v2050, 0
        %2053 = vset.pattern.permute.xlu0 0
        %2054 = vperm.xlu0 %2053, %v2052
        %v2055 = vpop.permute.xlu0 %2054
        %v2057 = vadd.f32 %v2042, %v2055
        %v2058 = vadd.f32 %v2043, %v2055
        %v2059 = vadd.f32 %v2044, %v2055
        %v2060 = vadd.f32 %v2045, %v2055
        %v2061 = vadd.f32 %v2046, %v2055
        %v2062 = vadd.f32 %v2047, %v2055
        %v2063 = vadd.f32 %v2048, %v2055
        %v2064 = vadd.f32 %v2049, %v2055
        %v2065 = vld [vmem:[%s13] sm:$0x1]
        %v2067 = vperm.slane %v2065, 0
        %v2068 = vlaneseq
        %v2069 = vshrl.u32 %v2068, 7
        %2071 = vset.pattern.permute.xlu0 %v2069
        %2072 = vperm.xlu0 %2071, %v2067
        %v2073 = vpop.permute.xlu0 %2072
        %v2075 = vmul.f32 %v2057, %v2073
        %v2076 = vmul.f32 %v2058, %v2073
        %v2077 = vmul.f32 %v2059, %v2073
        %v2078 = vmul.f32 %v2060, %v2073
        %v2079 = vmul.f32 %v2061, %v2073
        %v2080 = vmul.f32 %v2062, %v2073
        %v2081 = vmul.f32 %v2063, %v2073
        %v2082 = vmul.f32 %v2064, %v2073
        %2091 = vset.pattern.permute.xlu0 0
        %2092 = vperm.xlu0 %2091, %v2075
        %v2093 = vpop.permute.xlu0 %2092
        %2094 = vset.pattern.permute.xlu0 0
        %2095 = vperm.xlu0 %2094, %v2076
        %v2096 = vpop.permute.xlu0 %2095
        %2097 = vset.pattern.permute.xlu0 0
        %2098 = vperm.xlu0 %2097, %v2077
        %v2099 = vpop.permute.xlu0 %2098
        %2100 = vset.pattern.permute.xlu0 0
        %2101 = vperm.xlu0 %2100, %v2078
        %v2102 = vpop.permute.xlu0 %2101
        %2103 = vset.pattern.permute.xlu0 0
        %2104 = vperm.xlu0 %2103, %v2079
        %v2105 = vpop.permute.xlu0 %2104
        %2106 = vset.pattern.permute.xlu0 0
        %2107 = vperm.xlu0 %2106, %v2080
        %v2108 = vpop.permute.xlu0 %2107
        %2109 = vset.pattern.permute.xlu0 0
        %2110 = vperm.xlu0 %2109, %v2081
        %v2111 = vpop.permute.xlu0 %2110
        %2112 = vset.pattern.permute.xlu0 0
        %2113 = vperm.xlu0 %2112, %v2082
        %v2114 = vpop.permute.xlu0 %2113
        %v2115 = vlaneseq
        %v2116 = vand.u32 %v2115, 127
        %v2117 = vperm.slane %v2093, %v2116
        %v2118 = vperm.slane %v2096, %v2116
        %v2119 = vperm.slane %v2099, %v2116
        %v2120 = vperm.slane %v2102, %v2116
        %v2121 = vperm.slane %v2105, %v2116
        %v2122 = vperm.slane %v2108, %v2116
        %v2123 = vperm.slane %v2111, %v2116
        %v2124 = vperm.slane %v2114, %v2116
        %vm2125 = vcmask 1041409
        %v2126 = vsel %vm2125, %v2118, %v2117
        %vm2127 = vcmask 1042434
        %v2128 = vsel %vm2127, %v2119, %v2126
        %vm2129 = vcmask 1043459
        %v2130 = vsel %vm2129, %v2120, %v2128
        %vm2131 = vcmask 1044484
        %v2132 = vsel %vm2131, %v2121, %v2130
        %vm2133 = vcmask 1045509
        %v2134 = vsel %vm2133, %v2122, %v2132
        %vm2135 = vcmask 1046534
        %v2136 = vsel %vm2135, %v2123, %v2134
        %vm2137 = vcmask 1047559
        %v2138 = vsel %vm2137, %v2124, %v2136
        %v2140 = vsel %vm843, %v2138, 0.0
        %2141 = vadd.xlane.f32.xlu0 %v2140
        %v2142 = vpop.xlane.xlu0 %2141
        %v2143 = vld [vmem:[#allocation7] sm:$0x1]
        %v2145 = vperm.slane %v2143, 0
        %v2147 = vadd.f32 %v2142, %v2145
        %vm2148 = vcmask 7168
        %2149 = vst.msk [vmem:[%s537] sm:$0xff] %vm2148, %v2147
        %p2150 = scmp.lt.s32.totalorder %s32, 1
        %s2151 = scalar_select %p2150, %s32, 1
        %s2152 = smul.addr %s2151, 8
        %s2153 = scalar_lea.vmem %s15, %s2152
        // Predicated region
        $region100: #{net_forward.1} parent=79 // pred_check
          %p2154 = pneg %p370
        $region101: #{net_forward.1} parent=79 // pred_check_branch
          %2156 = sbr.rel (%p2154) target = $region103
        $region102: #{net_forward.1} parent=79 // pred_region
          _
        $region103: #{net_forward.1} parent=79 // pred_fallthru
          _
      $region80: #{net_forward.1} parent=5 // pred_fallthru
        _
      %p2157 = scmp.le.s32.totalorder 2, %s27
      // Predicated region
      $region104: #{net_forward.1} parent=5 // pred_check
        %p2158 = pneg %p2157
      $region105: #{net_forward.1} parent=5 // pred_check_branch
        %2160 = sbr.rel (%p2158) target = $region107
      $region106: #{net_forward.1} parent=5 // pred_region
        %s2161 = ssub.s32 %s27, 2
        // Predicated region
        $region108: #{net_forward.1} parent=106 // pred_check
          %p2162 = pneg %p376
        $region109: #{net_forward.1} parent=106 // pred_check_branch
          %2164 = sbr.rel (%p2162) target = $region111
        $region110: #{net_forward.1} parent=106 // pred_region
          %p2165 = scmp.lt.s32.totalorder %s33, 1
          %s2166 = scalar_select %p2165, %s33, 1
          %s2167 = smul.addr %s2166, 8
          %s2168 = scalar_lea.vmem %s15, %s2167
        $region111: #{net_forward.1} parent=106 // pred_fallthru
          _
      $region107: #{net_forward.1} parent=5 // pred_fallthru
        _
    $region6: #{net_forward.1} parent=1 // loop_footer
      %s31 = sadd.s32 1, %s27
    $region7: #{net_forward.1} parent=1 // loop_footer_branch
      %26 = sbr.rel target = $region3
    $region8: #{net_forward.1} parent=1 // loop_exit
      _
    %2169 = vsyncpa [#allocation9], 1
    %s2170 = scalar_lea.sflag [#allocation9], 1
    %2171 = vsyncpa %s2170, 1
    %2172 = vsyncpa [#allocation11], 1

</llo_original>
